<compile_context>
chip_gen: v7x
topology: tpu7x:2x2x1
jax: 0.10.0
libtpu: 0.0.40
codegen_flags: <defaults>
</compile_context>

<pallas_src>
import math
import functools

import jax
import jax.numpy as jnp
from jax.experimental import pallas as pl
from jax.experimental.pallas import tpu as pltpu

NEG_INIT = -1e38    # finite "minus infinity" for the running max
MASK_VALUE = -1e30  # masked_fill value (plays the role of torch.finfo(...).min)


def _sdpa_kernel(*refs, scale, has_mask):
    if has_mask:
        q_ref, k_ref, v_ref, mask_ref, o_ref, q_sc, m_sc, l_sc, acc_sc = refs
    else:
        q_ref, k_ref, v_ref, o_ref, q_sc, m_sc, l_sc, acc_sc = refs
        mask_ref = None

    ki = pl.program_id(2)

    # Reset the online-softmax state at the start of each key sweep and hoist
    # the q*scale + cast out of the ki loop (q block is identical across ki).
    @pl.when(ki == 0)
    def _():
        q_sc[...] = (q_ref[0].astype(jnp.float32) * scale).astype(jnp.bfloat16)
        m_sc[...] = jnp.full_like(m_sc, NEG_INIT)
        l_sc[...] = jnp.zeros_like(l_sc)
        acc_sc[...] = jnp.zeros_like(acc_sc)

    # Contract over D directly -- no k.T materialization.  bf16 MXU operands,
    # f32 accumulation.
    s = jax.lax.dot_general(q_sc[...], k_ref[0],
                            dimension_numbers=(((1,), (1,)), ((), ())),
                            preferred_element_type=jnp.float32)       # (TQ, TK)

    if has_mask:
        # masked_fill(mask == 1, dtype_min): same constant on every masked
        # entry, so fully-masked rows degrade to uniform weights like PyTorch.
        s = jnp.where(mask_ref[0] == 1, MASK_VALUE, s)

    m_prev = m_sc[...]
    m_new = jnp.maximum(m_prev, s.max(axis=-1, keepdims=True))
    alpha = jnp.exp(m_prev - m_new)
    p = jnp.exp(s - m_new)
    l_sc[...] = alpha * l_sc[...] + p.sum(axis=-1, keepdims=True)
    acc_sc[...] = alpha * acc_sc[...] + jnp.dot(
        p.astype(jnp.bfloat16), v_ref[0],
        preferred_element_type=jnp.float32)
    m_sc[...] = m_new

    # TODO(synk): dropout on the attention weights is treated as identity
    # (inference / eval mode).

    @pl.when(ki == pl.num_programs(2) - 1)
    def _():
        inv = pl.reciprocal(l_sc[...], approx=True)   # l > 0 always
        o_ref[0] = (acc_sc[...] * inv).astype(o_ref.dtype)


def _vmem_limit_bytes(tq, tk, D, out_bytes, has_mask):
    """Conservative double-buffered VMEM estimate with generous headroom."""
    db = 2
    in_bytes = (tq * D + 2 * tk * D) * 2 * db            # bf16 q, k, v blocks
    out_b = tq * D * out_bytes * db                       # output block
    msk = tq * tk * 1 * db if has_mask else 0             # int8 mask block
    scratch = tq * D * (4 + 2) + 2 * tq * 4               # acc f32 + q bf16 + m/l
    est = in_bytes + out_b + msk + scratch
    # 4x headroom, floor 16 MiB, cap 48 MiB (v7x physical VMEM is 64 MiB/TC).
    return int(min(max(4 * est, 16 << 20), 48 << 20))


def scaled_dot_product_attention(q, k, v, mask=None, *, d_att,
                                 dropout_rate=0.0, tq=256, tk=512):
    """q: [B, Sq, D], k/v: [B, Sk, D]; mask: [B, Sq, Sk] with 1 = masked out.

    Defaults (tq=256, tk=512) target v6e/v7x; on v5e tk=256 is recommended.
    Keep B * (Sq // tq) >= 2 so both v7x TensorCores get parallel work.
    """
    B, Sq, D = q.shape
    Sk = k.shape[1]
    out_dtype = q.dtype
    tq = min(tq, Sq)
    tk = min(tk, Sk)
    assert Sq % tq == 0 and Sk % tk == 0, "seq lengths must tile evenly"
    scale = 1.0 / math.sqrt(d_att)
    has_mask = mask is not None

    # One-time wrapper cast: halves q/k/v HBM traffic (K/V are re-read nQ
    # times) and removes per-step casts.  Softmax/accumulation stay f32.
    q = q.astype(jnp.bfloat16)
    k = k.astype(jnp.bfloat16)
    v = v.astype(jnp.bfloat16)

    in_specs = [
        pl.BlockSpec((1, tq, D), lambda b, qi, ki: (b, qi, 0)),
        pl.BlockSpec((1, tk, D), lambda b, qi, ki: (b, ki, 0)),
        pl.BlockSpec((1, tk, D), lambda b, qi, ki: (b, ki, 0)),
    ]
    args = [q, k, v]
    if has_mask:
        # int8 mask: 4x less DMA + VMEM than int32 (it is the dominant stream).
        in_specs.append(pl.BlockSpec((1, tq, tk), lambda b, qi, ki: (b, qi, ki)))
        args.append(mask.astype(jnp.int8))

    kernel = functools.partial(_sdpa_kernel, scale=scale, has_mask=has_mask)

    return pl.pallas_call(
        kernel,
        out_shape=jax.ShapeDtypeStruct((B, Sq, D), out_dtype),
        grid_spec=pltpu.PrefetchScalarGridSpec(
            num_scalar_prefetch=0,
            grid=(B, Sq // tq, Sk // tk),
            in_specs=in_specs,
            out_specs=pl.BlockSpec((1, tq, D), lambda b, qi, ki: (b, qi, 0)),
            scratch_shapes=[
                pltpu.VMEM((tq, D), jnp.bfloat16),  # scaled q (hoisted)
                pltpu.VMEM((tq, 1), jnp.float32),   # running max
                pltpu.VMEM((tq, 1), jnp.float32),   # running denominator
                pltpu.VMEM((tq, D), jnp.float32),   # running numerator
            ],
        ),
        compiler_params=pltpu.CompilerParams(
            dimension_semantics=("parallel", "parallel", "arbitrary"),
            vmem_limit_bytes=_vmem_limit_bytes(
                tq, tk, D, jnp.dtype(out_dtype).itemsize, has_mask)),
    )(*args)


def _reference(q, k, v, mask, d_att):
    """Dense f32 JAX reference mirroring the PyTorch forward (OUTPUT_ONLY)."""
    scores = jnp.einsum("bqd,bkd->bqk", q, k) / math.sqrt(d_att)
    if mask is not None:
        scores = jnp.where(mask == 1, jnp.finfo(scores.dtype).min, scores)
    weights = jax.nn.softmax(scores, axis=-1)
    return jnp.einsum("bqk,bkd->bqd", weights, v)


if __name__ == "__main__":
    # Module hyper-parameters (no learned parameters in the module).
    d_att = 128
    dropout_rate = 0.0          # eval mode -> identity either way
    B, S, D = 2, 256, d_att

    key = jax.random.PRNGKey(0)
    kq, kk, kv, km = jax.random.split(key, 4)
    q = jax.random.normal(kq, (B, S, D), dtype=jnp.float32)
    k = jax.random.normal(kk, (B, S, D), dtype=jnp.float32)
    v = jax.random.normal(kv, (B, S, D), dtype=jnp.float32)

    # Default call path: mask=None, OUTPUT_ONLY.
    out = scaled_dot_product_attention(q, k, v, d_att=d_att,
                                       dropout_rate=dropout_rate)
    out = jax.block_until_ready(out)
    ref = _reference(q, k, v, None, d_att)
    assert out.shape == v.shape
    err = float(jnp.max(jnp.abs(out - ref)))
    assert jnp.allclose(out, ref, atol=2e-2, rtol=2e-2), err

    # Masked path (mask == 1 -> masked out), including one fully-masked row.
    mask = (jax.random.uniform(km, (B, S, S)) < 0.3).astype(jnp.int32)
    mask = mask.at[0, 0, :].set(1)
    out_m = scaled_dot_product_attention(q, k, v, mask, d_att=d_att,
                                         dropout_rate=dropout_rate)
    out_m = jax.block_until_ready(out_m)
    ref_m = _reference(q, k, v, mask, d_att)
    err_m = float(jnp.max(jnp.abs(out_m - ref_m)))
    assert jnp.allclose(out_m, ref_m, atol=2e-2, rtol=2e-2), err_m

    print("KERNEL_OK")
</pallas_src>

<mosaic_0001>
module attributes {stable_mosaic.version = 11 : i64} {
  func.func @_sdpa_kernel(%arg0: i32, %arg1: i32, %arg2: i32, %arg3: memref<1x256x128xbf16, #tpu.memory_space<vmem>>, %arg4: memref<1x256x128xbf16, #tpu.memory_space<vmem>>, %arg5: memref<1x256x128xbf16, #tpu.memory_space<vmem>>, %arg6: memref<1x256x128xf32, #tpu.memory_space<vmem>>, %arg7: memref<256x128xbf16, #tpu.memory_space<vmem>>, %arg8: memref<256x1xf32, #tpu.memory_space<vmem>>, %arg9: memref<256x1xf32, #tpu.memory_space<vmem>>, %arg10: memref<256x128xf32, #tpu.memory_space<vmem>>) attributes {dimension_semantics = [#tpu.dimension_semantics<parallel>, #tpu.dimension_semantics<parallel>, #tpu.dimension_semantics<arbitrary>], iteration_bounds = array<i64: 2, 1, 1>, scalar_prefetch = 0 : i64, scratch_operands = 4 : i64, tpu.core_type = #tpu.core_type<tc>, window_params = [{transform_indices = @transform_0, window_bounds = array<i64: 1, 256, 128>}, {transform_indices = @transform_1, window_bounds = array<i64: 1, 256, 128>}, {transform_indices = @transform_2, window_bounds = array<i64: 1, 256, 128>}, {transform_indices = @transform_3, window_bounds = array<i64: 1, 256, 128>}]} {
    %c0_i32 = arith.constant 0 : i32
    %0 = arith.cmpi eq, %arg2, %c0_i32 : i32
    %1 = arith.extui %0 : i1 to i32
    %c0_i32_0 = arith.constant 0 : i32
    %2 = arith.cmpi ne, %1, %c0_i32_0 : i32
    scf.if %2 {
      %c0_25 = arith.constant 0 : index
      %c0_26 = arith.constant 0 : index
      %c0_27 = arith.constant 0 : index
      %35 = vector.load %arg3[%c0_25, %c0_26, %c0_27] : memref<1x256x128xbf16, #tpu.memory_space<vmem>>, vector<1x256x128xbf16>
      %36 = vector.shape_cast %35 : vector<1x256x128xbf16> to vector<256x128xbf16>
      %37 = arith.extf %36 : vector<256x128xbf16> to vector<256x128xf32>
      %cst_28 = arith.constant 0.0883883461 : f32
      %38 = vector.broadcast %cst_28 : f32 to vector<256x128xf32>
      %39 = arith.mulf %37, %38 : vector<256x128xf32>
      %40 = arith.truncf %39 : vector<256x128xf32> to vector<256x128xbf16>
      %c0_29 = arith.constant 0 : index
      %c0_30 = arith.constant 0 : index
      %41 = vector.load %arg7[%c0_29, %c0_30] : memref<256x128xbf16, #tpu.memory_space<vmem>>, vector<256x128xbf16>
      tpu.vector_store %arg7[%c0_29, %c0_30], %40 {strides = array<i32>} : memref<256x128xbf16, #tpu.memory_space<vmem>>, vector<256x128xbf16>,
      %cst_31 = arith.constant -9.99999968E+37 : f32
      %42 = vector.broadcast %cst_31 : f32 to vector<256x1xf32>
      %c0_32 = arith.constant 0 : index
      %c0_33 = arith.constant 0 : index
      %43 = vector.load %arg8[%c0_32, %c0_33] : memref<256x1xf32, #tpu.memory_space<vmem>>, vector<256x1xf32>
      tpu.vector_store %arg8[%c0_32, %c0_33], %42 {strides = array<i32>} : memref<256x1xf32, #tpu.memory_space<vmem>>, vector<256x1xf32>,
      %cst_34 = arith.constant 0.000000e+00 : f32
      %44 = vector.broadcast %cst_34 : f32 to vector<256x1xf32>
      %c0_35 = arith.constant 0 : index
      %c0_36 = arith.constant 0 : index
      %45 = vector.load %arg9[%c0_35, %c0_36] : memref<256x1xf32, #tpu.memory_space<vmem>>, vector<256x1xf32>
      tpu.vector_store %arg9[%c0_35, %c0_36], %44 {strides = array<i32>} : memref<256x1xf32, #tpu.memory_space<vmem>>, vector<256x1xf32>,
      %cst_37 = arith.constant 0.000000e+00 : f32
      %46 = vector.broadcast %cst_37 : f32 to vector<256x128xf32>
      %c0_38 = arith.constant 0 : index
      %c0_39 = arith.constant 0 : index
      %47 = vector.load %arg10[%c0_38, %c0_39] : memref<256x128xf32, #tpu.memory_space<vmem>>, vector<256x128xf32>
      tpu.vector_store %arg10[%c0_38, %c0_39], %46 {strides = array<i32>} : memref<256x128xf32, #tpu.memory_space<vmem>>, vector<256x128xf32>,
    } else {
    }
    %c0 = arith.constant 0 : index
    %c0_1 = arith.constant 0 : index
    %3 = vector.load %arg7[%c0, %c0_1] : memref<256x128xbf16, #tpu.memory_space<vmem>>, vector<256x128xbf16>
    %c0_2 = arith.constant 0 : index
    %c0_3 = arith.constant 0 : index
    %c0_4 = arith.constant 0 : index
    %4 = vector.load %arg4[%c0_2, %c0_3, %c0_4] : memref<1x256x128xbf16, #tpu.memory_space<vmem>>, vector<1x256x128xbf16>
    %5 = vector.shape_cast %4 : vector<1x256x128xbf16> to vector<256x128xbf16>
    %cst = arith.constant dense<0.000000e+00> : vector<256x256xf32>
    %6 = tpu.matmul %3, %5, %cst {dimension_numbers = #tpu.dot_dimension_numbers<[1], [1], [0], [0], [0, 0, 1, 0], [], []>} : vector<256x128xbf16>, vector<256x128xbf16>, vector<256x256xf32> -> vector<256x256xf32>
    %c0_5 = arith.constant 0 : index
    %c0_6 = arith.constant 0 : index
    %7 = vector.load %arg8[%c0_5, %c0_6] : memref<256x1xf32, #tpu.memory_space<vmem>>, vector<256x1xf32>
    %cst_7 = arith.constant dense<0xFF800000> : vector<256xf32>
    %8 = vector.multi_reduction <maximumf>, %6, %cst_7 [1] : vector<256x256xf32> to vector<256xf32>
    %9 = vector.shape_cast %8 : vector<256xf32> to vector<256x1xf32>
    %10 = arith.maximumf %7, %9 : vector<256x1xf32>
    %11 = arith.subf %7, %10 : vector<256x1xf32>
    %12 = math.exp %11 : vector<256x1xf32>
    %13 = vector.broadcast %10 : vector<256x1xf32> to vector<256x256xf32>
    %14 = arith.subf %6, %13 : vector<256x256xf32>
    %15 = math.exp %14 : vector<256x256xf32>
    %c0_8 = arith.constant 0 : index
    %c0_9 = arith.constant 0 : index
    %16 = vector.load %arg9[%c0_8, %c0_9] : memref<256x1xf32, #tpu.memory_space<vmem>>, vector<256x1xf32>
    %17 = arith.mulf %12, %16 : vector<256x1xf32>
    %cst_10 = arith.constant dense<0.000000e+00> : vector<256xf32>
    %18 = vector.multi_reduction <add>, %15, %cst_10 [1] : vector<256x256xf32> to vector<256xf32>
    %19 = vector.shape_cast %18 : vector<256xf32> to vector<256x1xf32>
    %20 = arith.addf %17, %19 : vector<256x1xf32>
    %c0_11 = arith.constant 0 : index
    %c0_12 = arith.constant 0 : index
    %21 = vector.load %arg9[%c0_11, %c0_12] : memref<256x1xf32, #tpu.memory_space<vmem>>, vector<256x1xf32>
    tpu.vector_store %arg9[%c0_11, %c0_12], %20 {strides = array<i32>} : memref<256x1xf32, #tpu.memory_space<vmem>>, vector<256x1xf32>,
    %c0_13 = arith.constant 0 : index
    %c0_14 = arith.constant 0 : index
    %22 = vector.load %arg10[%c0_13, %c0_14] : memref<256x128xf32, #tpu.memory_space<vmem>>, vector<256x128xf32>
    %23 = vector.broadcast %12 : vector<256x1xf32> to vector<256x128xf32>
    %24 = arith.mulf %23, %22 : vector<256x128xf32>
    %25 = arith.truncf %15 : vector<256x256xf32> to vector<256x256xbf16>
    %c0_15 = arith.constant 0 : index
    %c0_16 = arith.constant 0 : index
    %c0_17 = arith.constant 0 : index
    %26 = vector.load %arg5[%c0_15, %c0_16, %c0_17] : memref<1x256x128xbf16, #tpu.memory_space<vmem>>, vector<1x256x128xbf16>
    %27 = vector.shape_cast %26 : vector<1x256x128xbf16> to vector<256x128xbf16>
    %cst_18 = arith.constant dense<0.000000e+00> : vector<256x128xf32>
    %28 = tpu.matmul %25, %27, %cst_18 {dimension_numbers = #tpu.dot_dimension_numbers<[1], [0], [0], [1], [0, 0, 1, 1], [], []>} : vector<256x256xbf16>, vector<256x128xbf16>, vector<256x128xf32> -> vector<256x128xf32>
    %29 = arith.addf %24, %28 : vector<256x128xf32>
    %c0_19 = arith.constant 0 : index
    %c0_20 = arith.constant 0 : index
    %30 = vector.load %arg10[%c0_19, %c0_20] : memref<256x128xf32, #tpu.memory_space<vmem>>, vector<256x128xf32>
    tpu.vector_store %arg10[%c0_19, %c0_20], %29 {strides = array<i32>} : memref<256x128xf32, #tpu.memory_space<vmem>>, vector<256x128xf32>,
    %c0_21 = arith.constant 0 : index
    %c0_22 = arith.constant 0 : index
    %31 = vector.load %arg8[%c0_21, %c0_22] : memref<256x1xf32, #tpu.memory_space<vmem>>, vector<256x1xf32>
    tpu.vector_store %arg8[%c0_21, %c0_22], %10 {strides = array<i32>} : memref<256x1xf32, #tpu.memory_space<vmem>>, vector<256x1xf32>,
    %c0_i32_23 = arith.constant 0 : i32
    %32 = arith.cmpi eq, %arg2, %c0_i32_23 : i32
    %33 = arith.extui %32 : i1 to i32
    %c0_i32_24 = arith.constant 0 : i32
    %34 = arith.cmpi ne, %33, %c0_i32_24 : i32
    scf.if %34 {
      %c0_25 = arith.constant 0 : index
      %c0_26 = arith.constant 0 : index
      %35 = vector.load %arg9[%c0_25, %c0_26] : memref<256x1xf32, #tpu.memory_space<vmem>>, vector<256x1xf32>
      %36 = tpu.reciprocal %35 {approx = true} : vector<256x1xf32> -> vector<256x1xf32>
      %c0_27 = arith.constant 0 : index
      %c0_28 = arith.constant 0 : index
      %37 = vector.load %arg10[%c0_27, %c0_28] : memref<256x128xf32, #tpu.memory_space<vmem>>, vector<256x128xf32>
      %38 = vector.broadcast %36 : vector<256x1xf32> to vector<256x128xf32>
      %39 = arith.mulf %37, %38 : vector<256x128xf32>
      %c0_29 = arith.constant 0 : index
      %c0_30 = arith.constant 0 : index
      %c0_31 = arith.constant 0 : index
      %40 = vector.load %arg6[%c0_29, %c0_30, %c0_31] : memref<1x256x128xf32, #tpu.memory_space<vmem>>, vector<1x256x128xf32>
      %41 = vector.shape_cast %40 : vector<1x256x128xf32> to vector<256x128xf32>
      %42 = vector.shape_cast %39 : vector<256x128xf32> to vector<1x256x128xf32>
      tpu.vector_store %arg6[%c0_29, %c0_30, %c0_31], %42 {strides = array<i32>} : memref<1x256x128xf32, #tpu.memory_space<vmem>>, vector<1x256x128xf32>,
    } else {
    }
    return
  }
  func.func @transform_0(%arg0: i32, %arg1: i32, %arg2: i32) -> (i32, i32, i32) {
    %c0_i32 = arith.constant 0 : i32
    %c0_i32_0 = arith.constant 0 : i32
    return %arg0, %arg1, %c0_i32 : i32, i32, i32
  }
  func.func @transform_1(%arg0: i32, %arg1: i32, %arg2: i32) -> (i32, i32, i32) {
    %c0_i32 = arith.constant 0 : i32
    %c0_i32_0 = arith.constant 0 : i32
    return %arg0, %arg2, %c0_i32 : i32, i32, i32
  }
  func.func @transform_2(%arg0: i32, %arg1: i32, %arg2: i32) -> (i32, i32, i32) {
    %c0_i32 = arith.constant 0 : i32
    %c0_i32_0 = arith.constant 0 : i32
    return %arg0, %arg2, %c0_i32 : i32, i32, i32
  }
  func.func @transform_3(%arg0: i32, %arg1: i32, %arg2: i32) -> (i32, i32, i32) {
    %c0_i32 = arith.constant 0 : i32
    %c0_i32_0 = arith.constant 0 : i32
    return %arg0, %arg1, %c0_i32 : i32, i32, i32
  }
}

</mosaic_0001>

<llo_original>
// kernel: tpu_custom_call.1
$region0: #{tpu_custom_call.1}
  #allocation0 [shape = 'u32[]', space=smem, size = 0x4, offset = 0x4, fixed_abs, tag = 'smem constant byte address 0x4 - core index']
  #allocation1 [shape = 'u32[144,128]{1,0:T(1,128)}', space=vmem, size = 0x12000, scoped, tag = 'internal scratch']
  #allocation2 [shape = 'bf16[256,128]{1,0:T(16,128)(2,1)}', space=vmem, size = 0x10000, scoped, tag = 'scratch operand']
  #allocation3 [shape = 'f32[256,1]{1,0:T(8,128)}', space=vmem, size = 0x20000, scoped, tag = 'scratch operand']
  #allocation4 [shape = 'f32[256,1]{1,0:T(8,128)}', space=vmem, size = 0x20000, scoped, tag = 'scratch operand']
  #allocation5 [shape = 'f32[256,128]{1,0:T(8,128)}', space=vmem, size = 0x20000, scoped, tag = 'scratch operand']
  %s0 = inlined_call_operand.hbm [shape: bf16[2,256,128], index: 0, kind: input, shape index: {}]
  %s1 = inlined_call_operand.hbm [shape: bf16[2,256,128], index: 1, kind: input, shape index: {}]
  %s2 = inlined_call_operand.hbm [shape: bf16[2,256,128], index: 2, kind: input, shape index: {}]
  %s3 = inlined_call_operand.hbm [shape: f32[2,256,128], index: 3, kind: output, shape index: {}]
  %s4 = sld [smem:[#allocation0]]
  $region65: #{tpu_custom_call.1} parent=0
    _
  %s6 = ssub.s32 1, %s4
  %s7 = scalar_select 0, %s6, %s4
  $region1: #{tpu_custom_call.1} parent=0
    #allocation6 [shape = 'u8[131072]{0}', space=vmem, size = 0x20000, scoped, tag = 'input window, operand 0']
    #allocation7 [shape = 's32[2]{0}', space=sflag, size = 0x8, scoped, tag = 'scoped memory for tpu_custom_call.1']
    #allocation8 [shape = 's32[2]{0}', space=sflag, size = 0x8, scoped, tag = 'scoped memory for tpu_custom_call.1']
    #allocation9 [shape = 'u8[131072]{0}', space=vmem, size = 0x20000, scoped, tag = 'input window, operand 1']
    #allocation10 [shape = 's32[2]{0}', space=sflag, size = 0x8, scoped, tag = 'scoped memory for tpu_custom_call.1']
    #allocation11 [shape = 'u8[131072]{0}', space=vmem, size = 0x20000, scoped, tag = 'input window, operand 2']
    #allocation12 [shape = 'u8[262144]{0}', space=vmem, size = 0x40000, scoped, tag = 'output window, operand 0']
    %8 = vsyncpa [#allocation7], 0
    %s9 = scalar_lea.sflag [#allocation7], 1
    %10 = vsyncpa %s9, 0
    %11 = vsyncpa [#allocation10], 0
    %s12 = scalar_lea.sflag [#allocation10], 1
    %13 = vsyncpa %s12, 0
    %14 = vsyncpa [#allocation8], 0
    %s15 = scalar_lea.sflag [#allocation8], 1
    %16 = vsyncpa %s15, 0
    loop: start=0, step=1, limit=4
    $region2: #{tpu_custom_call.1} parent=1 // loop_pre_header
      _
    $region3: #{tpu_custom_call.1} parent=1 // loop_header
      %s18 = sphi 0, %s22
      %p19 = scmp.ge.s32.totalorder %s18, 4
      %s25 = sphi 0, %s44
      %s26 = sphi 0, %s40
      %s27 = sphi 0, %s36
      %s28 = sphi 0, %s25
      %s29 = sphi 0, %s26
      %s30 = sphi 0, %s27
      %s31 = sphi 0, %s28
      %s32 = sphi 0, %s29
      %s33 = sphi 0, %s30
      %s49 = sphi 0, %s51
      %s52 = sphi 0, %s49
      %s53 = sphi 0, %s52
      %s69 = sphi 0, %s53
      %s77 = sphi 0, %s79
      %s80 = sphi 0, %s77
      %s81 = sphi 0, %s80
      %s97 = sphi 0, %s81
      %s105 = sphi 0, %s107
      %s108 = sphi 0, %s105
      %s109 = sphi 0, %s108
      %s125 = sphi 0, %s109
      %s133 = sphi 0, %s135
      %s136 = sphi 0, %s133
      %s137 = sphi 0, %s136
      %s153 = sphi 0, %s137
    $region4: #{tpu_custom_call.1} parent=1 // loop_header_branch
      %21 = sbr.rel (%p19) target = $region8
    $region5: #{tpu_custom_call.1} parent=1 // loop_body
      %s23 = ssub.s32 %s18, 1
      %s24 = ssub.s32 %s18, 2
      %s34 = sadd.s32 1, %s27
      %p35 = scmp.ge.s32.totalorder %s34, 1
      %s36 = scalar_select %p35, 0, %s34
      %s37 = sadd.s32 1, %s26
      %s38 = scalar_select %p35, %s37, %s26
      %p39 = scmp.ge.s32.totalorder %s38, 1
      %s40 = scalar_select %p39, 0, %s38
      %s41 = sadd.s32 1, %s25
      %s42 = scalar_select %p39, %s41, %s25
      %p43 = scmp.ge.s32.totalorder %s42, 2
      %s44 = scalar_select %p43, 0, %s42
      %s45 = ssub.s32 %s25, %s44
      %s46 = ssub.s32 %s26, %s40
      %s47 = sor.u32 %s45, %s46
      %p48 = scmp.eq.s32.totalorder %s47, 0
      %s50 = sadd.s32 %s49, 1
      %s51 = scalar_select %p48, %s49, %s50
      %p54 = pneg %p48
      %p55 = scmp.eq.s32.totalorder %s18, 1
      %p56 = por %p54, %p55
      %p57 = scmp.ne.s32.totalorder %s49, %s52
      %p58 = scmp.eq.s32.totalorder %s18, 0
      %p59 = por %p57, %p58
      %p60 = scmp.ne.s32.totalorder %s49, %s52
      %p61 = scmp.eq.s32.totalorder %s23, 1
      %p62 = por %p60, %p61
      %p63 = scmp.ne.s32.totalorder %s52, %s53
      %p64 = scmp.eq.s32.totalorder %s23, 0
      %p65 = por %p63, %p64
      %p66 = scmp.ne.s32.totalorder %s52, %s53
      %p67 = scmp.eq.s32.totalorder %s24, 1
      %p68 = por %p66, %p67
      %p70 = scmp.ne.s32.totalorder %s53, %s69
      %p71 = scmp.eq.s32.totalorder %s24, 0
      %p72 = por %p70, %p71
      %s73 = ssub.s32 %s25, %s44
      %s74 = ssub.s32 %s27, %s36
      %s75 = sor.u32 %s73, %s74
      %p76 = scmp.eq.s32.totalorder %s75, 0
      %s78 = sadd.s32 %s77, 1
      %s79 = scalar_select %p76, %s77, %s78
      %p82 = pneg %p76
      %p83 = scmp.eq.s32.totalorder %s18, 1
      %p84 = por %p82, %p83
      %p85 = scmp.ne.s32.totalorder %s77, %s80
      %p86 = scmp.eq.s32.totalorder %s18, 0
      %p87 = por %p85, %p86
      %p88 = scmp.ne.s32.totalorder %s77, %s80
      %p89 = scmp.eq.s32.totalorder %s23, 1
      %p90 = por %p88, %p89
      %p91 = scmp.ne.s32.totalorder %s80, %s81
      %p92 = scmp.eq.s32.totalorder %s23, 0
      %p93 = por %p91, %p92
      %p94 = scmp.ne.s32.totalorder %s80, %s81
      %p95 = scmp.eq.s32.totalorder %s24, 1
      %p96 = por %p94, %p95
      %p98 = scmp.ne.s32.totalorder %s81, %s97
      %p99 = scmp.eq.s32.totalorder %s24, 0
      %p100 = por %p98, %p99
      %s101 = ssub.s32 %s25, %s44
      %s102 = ssub.s32 %s27, %s36
      %s103 = sor.u32 %s101, %s102
      %p104 = scmp.eq.s32.totalorder %s103, 0
      %s106 = sadd.s32 %s105, 1
      %s107 = scalar_select %p104, %s105, %s106
      %p110 = pneg %p104
      %p111 = scmp.eq.s32.totalorder %s18, 1
      %p112 = por %p110, %p111
      %p113 = scmp.ne.s32.totalorder %s105, %s108
      %p114 = scmp.eq.s32.totalorder %s18, 0
      %p115 = por %p113, %p114
      %p116 = scmp.ne.s32.totalorder %s105, %s108
      %p117 = scmp.eq.s32.totalorder %s23, 1
      %p118 = por %p116, %p117
      %p119 = scmp.ne.s32.totalorder %s108, %s109
      %p120 = scmp.eq.s32.totalorder %s23, 0
      %p121 = por %p119, %p120
      %p122 = scmp.ne.s32.totalorder %s108, %s109
      %p123 = scmp.eq.s32.totalorder %s24, 1
      %p124 = por %p122, %p123
      %p126 = scmp.ne.s32.totalorder %s109, %s125
      %p127 = scmp.eq.s32.totalorder %s24, 0
      %p128 = por %p126, %p127
      %s129 = ssub.s32 %s25, %s44
      %s130 = ssub.s32 %s26, %s40
      %s131 = sor.u32 %s129, %s130
      %p132 = scmp.eq.s32.totalorder %s131, 0
      %s134 = sadd.s32 %s133, 1
      %s135 = scalar_select %p132, %s133, %s134
      %p138 = pneg %p132
      %p139 = scmp.eq.s32.totalorder %s18, 1
      %p140 = por %p138, %p139
      %p141 = scmp.ne.s32.totalorder %s133, %s136
      %p142 = scmp.eq.s32.totalorder %s18, 0
      %p143 = por %p141, %p142
      %p144 = scmp.ne.s32.totalorder %s133, %s136
      %p145 = scmp.eq.s32.totalorder %s23, 1
      %p146 = por %p144, %p145
      %p147 = scmp.ne.s32.totalorder %s136, %s137
      %p148 = scmp.eq.s32.totalorder %s23, 0
      %p149 = por %p147, %p148
      %p150 = scmp.ne.s32.totalorder %s136, %s137
      %p151 = scmp.eq.s32.totalorder %s24, 1
      %p152 = por %p150, %p151
      %p154 = scmp.ne.s32.totalorder %s137, %s153
      %p155 = scmp.eq.s32.totalorder %s24, 0
      %p156 = por %p154, %p155
      %p157 = scmp.le.s32.totalorder 1, %s18
      %p158 = scmp.lt.s32.totalorder %s18, 3
      %p159 = pnand %p157, %p158
      %p160 = pneg %p159
      // Predicated region
      $region9: #{tpu_custom_call.1} parent=5 // pred_check
        _
      $region10: #{tpu_custom_call.1} parent=5 // pred_check_branch
        %162 = sbr.rel (%p159) target = $region12
      $region11: #{tpu_custom_call.1} parent=5 // pred_region
        %s163 = ssub.s32 %s18, 1
      $region12: #{tpu_custom_call.1} parent=5 // pred_fallthru
        _
      %p164 = scmp.lt.s32.totalorder %s18, 2
      // Predicated region
      $region13: #{tpu_custom_call.1} parent=5 // pred_check
        %p165 = pneg %p164
      $region14: #{tpu_custom_call.1} parent=5 // pred_check_branch
        %167 = sbr.rel (%p165) target = $region16
      $region15: #{tpu_custom_call.1} parent=5 // pred_region
        // Predicated region
        $region17: #{tpu_custom_call.1} parent=15 // pred_check
          %p168 = pneg %p59
        $region18: #{tpu_custom_call.1} parent=15 // pred_check_branch
          %170 = sbr.rel (%p168) target = $region20
        $region19: #{tpu_custom_call.1} parent=15 // pred_region
          %s171 = sand.u32 %s49, 1
          %s172 = scalar_lea.sflag [#allocation7], %s171
          %s173 = sand.u32 %s49, 1
          %s174 = smul.addr %s173, 128
          %s175 = scalar_lea.vmem [#allocation6], %s174
          %s176 = smul.u32 32, %s26
          %s178 = ssub.s32 2048, 2048
          %179 = vsyncadd %s172, %s178
          %s180 = smul.addr %s25, 32
          %s181 = sadd.s32 %s176, %s180
          %s182 = smul.addr %s181, 64
          %s183 = scalar_lea.hbm %s0, %s182
          %s184 = sshll.u32 %s175, 4
          %s185 = int_to_ptr.vmem [resolvable:$true] %s184
          %190 = dma.hbm_to_vmem [thread:$0]  %s183, 2048, %s185, %s172, 64, 64, 4
        $region20: #{tpu_custom_call.1} parent=15 // pred_fallthru
          _
        // Predicated region
        $region21: #{tpu_custom_call.1} parent=15 // pred_check
          %p191 = pneg %p87
        $region22: #{tpu_custom_call.1} parent=15 // pred_check_branch
          %193 = sbr.rel (%p191) target = $region24
        $region23: #{tpu_custom_call.1} parent=15 // pred_region
          %s194 = sand.u32 %s18, 1
          %s195 = scalar_lea.sflag [#allocation10], %s194
          %s196 = sand.u32 %s77, 1
          %s197 = smul.addr %s196, 128
          %s198 = scalar_lea.vmem [#allocation9], %s197
          %s199 = smul.u32 32, %s27
          %s201 = ssub.s32 2048, 2048
          %202 = vsyncadd %s195, %s201
          %s203 = smul.addr %s25, 32
          %s204 = sadd.s32 %s199, %s203
          %s205 = smul.addr %s204, 64
          %s206 = scalar_lea.hbm %s1, %s205
          %s207 = sshll.u32 %s198, 4
          %s208 = int_to_ptr.vmem [resolvable:$true] %s207
          %213 = dma.hbm_to_vmem [thread:$0]  %s206, 2048, %s208, %s195, 64, 64, 4
        $region24: #{tpu_custom_call.1} parent=15 // pred_fallthru
          _
        // Predicated region
        $region25: #{tpu_custom_call.1} parent=15 // pred_check
          %p214 = pneg %p115
        $region26: #{tpu_custom_call.1} parent=15 // pred_check_branch
          %216 = sbr.rel (%p214) target = $region28
        $region27: #{tpu_custom_call.1} parent=15 // pred_region
          %s217 = sand.u32 %s18, 1
          %s218 = scalar_lea.sflag [#allocation10], %s217
          %s219 = sand.u32 %s105, 1
          %s220 = smul.addr %s219, 128
          %s221 = scalar_lea.vmem [#allocation11], %s220
          %s222 = smul.u32 32, %s27
          %s224 = ssub.s32 2048, 2048
          %225 = vsyncadd %s218, %s224
          %s226 = smul.addr %s25, 32
          %s227 = sadd.s32 %s222, %s226
          %s228 = smul.addr %s227, 64
          %s229 = scalar_lea.hbm %s2, %s228
          %s230 = sshll.u32 %s221, 4
          %s231 = int_to_ptr.vmem [resolvable:$true] %s230
          %236 = dma.hbm_to_vmem [thread:$0]  %s229, 2048, %s231, %s218, 64, 64, 4
        $region28: #{tpu_custom_call.1} parent=15 // pred_fallthru
          _
      $region16: #{tpu_custom_call.1} parent=5 // pred_fallthru
        _
      %p237 = scmp.le.s32.totalorder 1, %s18
      %p238 = scmp.lt.s32.totalorder %s18, 3
      %p239 = pnand %p237, %p238
      %p240 = pneg %p239
      // Predicated region
      $region29: #{tpu_custom_call.1} parent=5 // pred_check
        _
      $region30: #{tpu_custom_call.1} parent=5 // pred_check_branch
        %242 = sbr.rel (%p239) target = $region32
      $region31: #{tpu_custom_call.1} parent=5 // pred_region
        %s243 = ssub.s32 %s18, 1
        %s244 = sand.u32 %s52, 1
        %s245 = scalar_lea.sflag [#allocation7], %s244
        %s246 = sand.u32 %s52, 1
        %s247 = smul.addr %s246, 128
        %s248 = scalar_lea.vmem [#allocation6], %s247
        // Predicated region
        $region33: #{tpu_custom_call.1} parent=31 // pred_check
          %p249 = pneg %p65
        $region34: #{tpu_custom_call.1} parent=31 // pred_check_branch
          %251 = sbr.rel (%p249) target = $region36
        $region35: #{tpu_custom_call.1} parent=31 // pred_region
          %252 = dma.done %s245, 2048
        $region36: #{tpu_custom_call.1} parent=31 // pred_fallthru
          _
        %s253 = sand.u32 %s23, 1
        %s254 = scalar_lea.sflag [#allocation10], %s253
        %s255 = sand.u32 %s80, 1
        %s256 = smul.addr %s255, 128
        %s257 = scalar_lea.vmem [#allocation9], %s256
        // Predicated region
        $region37: #{tpu_custom_call.1} parent=31 // pred_check
          %p258 = pneg %p93
        $region38: #{tpu_custom_call.1} parent=31 // pred_check_branch
          %260 = sbr.rel (%p258) target = $region40
        $region39: #{tpu_custom_call.1} parent=31 // pred_region
          %261 = dma.done %s254, 2048
        $region40: #{tpu_custom_call.1} parent=31 // pred_fallthru
          _
        %s262 = sand.u32 %s23, 1
        %s263 = scalar_lea.sflag [#allocation10], %s262
        %s264 = sand.u32 %s108, 1
        %s265 = smul.addr %s264, 128
        %s266 = scalar_lea.vmem [#allocation11], %s265
        // Predicated region
        $region41: #{tpu_custom_call.1} parent=31 // pred_check
          %p267 = pneg %p121
        $region42: #{tpu_custom_call.1} parent=31 // pred_check_branch
          %269 = sbr.rel (%p267) target = $region44
        $region43: #{tpu_custom_call.1} parent=31 // pred_region
          %270 = dma.done %s263, 2048
        $region44: #{tpu_custom_call.1} parent=31 // pred_fallthru
          _
        %s271 = sand.u32 %s52, 1
        %s272 = scalar_lea.sflag [#allocation7], %s271
        %s273 = sand.u32 %s52, 1
        %s274 = smul.addr %s273, 128
        %s275 = scalar_lea.vmem [#allocation6], %s274
        %p276 = pneg %p65
        %p277 = pneg %p62
        %s278 = sand.u32 %s23, 1
        %s279 = scalar_lea.sflag [#allocation10], %s278
        %s280 = sand.u32 %s80, 1
        %s281 = smul.addr %s280, 128
        %s282 = scalar_lea.vmem [#allocation9], %s281
        %p283 = pneg %p93
        %p284 = pneg %p90
        %s285 = sand.u32 %s23, 1
        %s286 = scalar_lea.sflag [#allocation10], %s285
        %s287 = sand.u32 %s108, 1
        %s288 = smul.addr %s287, 128
        %s289 = scalar_lea.vmem [#allocation11], %s288
        %p290 = pneg %p121
        %p291 = pneg %p118
        %p292 = pneg %p149
        %p293 = pneg %p146
        %s294 = sand.u32 %s136, 1
        %s295 = scalar_lea.sflag [#allocation8], %s294
        %s296 = sand.u32 %s136, 1
        %s297 = smul.addr %s296, 256
        %s298 = scalar_lea.vmem [#allocation12], %s297
        %s299 = smul.u32 32, %s29
        %s300 = smul.u32 32, %s30
        %s301 = smul.u32 32, %s30
        %s302 = smul.u32 32, %s29
        %p304 = scmp.eq.s32.totalorder %s30, 0
        // Predicated region
        $region45: #{tpu_custom_call.1} parent=31 // pred_check
          %p305 = pneg %p304
        $region46: #{tpu_custom_call.1} parent=31 // pred_check_branch
          %307 = sbr.rel (%p305) target = $region48
        $region47: #{tpu_custom_call.1} parent=31 // pred_region
          %v308 = vld [vmem:[%s248] sm:$0xf]
          %v309 = vld [vmem:[%s248 + $0x4] sm:$0xf]
          %v310 = vld [vmem:[%s248 + $0x8] sm:$0xf]
          %v311 = vld [vmem:[%s248 + $0xc] sm:$0xf]
          %v312 = vld [vmem:[%s248 + $0x10] sm:$0xf]
          %v313 = vld [vmem:[%s248 + $0x14] sm:$0xf]
          %v314 = vld [vmem:[%s248 + $0x18] sm:$0xf]
          %v315 = vld [vmem:[%s248 + $0x1c] sm:$0xf]
          %v316 = vld [vmem:[%s248 + $0x20] sm:$0xf]
          %v317 = vld [vmem:[%s248 + $0x24] sm:$0xf]
          %v318 = vld [vmem:[%s248 + $0x28] sm:$0xf]
          %v319 = vld [vmem:[%s248 + $0x2c] sm:$0xf]
          %v320 = vld [vmem:[%s248 + $0x30] sm:$0xf]
          %v321 = vld [vmem:[%s248 + $0x34] sm:$0xf]
          %v322 = vld [vmem:[%s248 + $0x38] sm:$0xf]
          %v323 = vld [vmem:[%s248 + $0x3c] sm:$0xf]
          %v324 = vld [vmem:[%s248 + $0x40] sm:$0xf]
          %v325 = vld [vmem:[%s248 + $0x44] sm:$0xf]
          %v326 = vld [vmem:[%s248 + $0x48] sm:$0xf]
          %v327 = vld [vmem:[%s248 + $0x4c] sm:$0xf]
          %v328 = vld [vmem:[%s248 + $0x50] sm:$0xf]
          %v329 = vld [vmem:[%s248 + $0x54] sm:$0xf]
          %v330 = vld [vmem:[%s248 + $0x58] sm:$0xf]
          %v331 = vld [vmem:[%s248 + $0x5c] sm:$0xf]
          %v332 = vld [vmem:[%s248 + $0x60] sm:$0xf]
          %v333 = vld [vmem:[%s248 + $0x64] sm:$0xf]
          %v334 = vld [vmem:[%s248 + $0x68] sm:$0xf]
          %v335 = vld [vmem:[%s248 + $0x6c] sm:$0xf]
          %v336 = vld [vmem:[%s248 + $0x70] sm:$0xf]
          %v337 = vld [vmem:[%s248 + $0x74] sm:$0xf]
          %v338 = vld [vmem:[%s248 + $0x78] sm:$0xf]
          %v339 = vld [vmem:[%s248 + $0x7c] sm:$0xf]
          %v340 = vunpack.c.l.bf16 %v308
          %v341 = vunpack.c.l.bf16 %v309
          %v342 = vunpack.c.l.bf16 %v310
          %v343 = vunpack.c.l.bf16 %v311
          %v344 = vunpack.c.l.bf16 %v312
          %v345 = vunpack.c.l.bf16 %v313
          %v346 = vunpack.c.l.bf16 %v314
          %v347 = vunpack.c.l.bf16 %v315
          %v348 = vunpack.c.l.bf16 %v316
          %v349 = vunpack.c.l.bf16 %v317
          %v350 = vunpack.c.l.bf16 %v318
          %v351 = vunpack.c.l.bf16 %v319
          %v352 = vunpack.c.l.bf16 %v320
          %v353 = vunpack.c.l.bf16 %v321
          %v354 = vunpack.c.l.bf16 %v322
          %v355 = vunpack.c.l.bf16 %v323
          %v356 = vunpack.c.l.bf16 %v324
          %v357 = vunpack.c.l.bf16 %v325
          %v358 = vunpack.c.l.bf16 %v326
          %v359 = vunpack.c.l.bf16 %v327
          %v360 = vunpack.c.l.bf16 %v328
          %v361 = vunpack.c.l.bf16 %v329
          %v362 = vunpack.c.l.bf16 %v330
          %v363 = vunpack.c.l.bf16 %v331
          %v364 = vunpack.c.l.bf16 %v332
          %v365 = vunpack.c.l.bf16 %v333
          %v366 = vunpack.c.l.bf16 %v334
          %v367 = vunpack.c.l.bf16 %v335
          %v368 = vunpack.c.l.bf16 %v336
          %v369 = vunpack.c.l.bf16 %v337
          %v370 = vunpack.c.l.bf16 %v338
          %v371 = vunpack.c.l.bf16 %v339
          %v372 = vmul.f32 %v340, 0.088388346
          %v373 = vmul.f32 %v341, 0.088388346
          %v374 = vmul.f32 %v342, 0.088388346
          %v375 = vmul.f32 %v343, 0.088388346
          %v376 = vmul.f32 %v344, 0.088388346
          %v377 = vmul.f32 %v345, 0.088388346
          %v378 = vmul.f32 %v346, 0.088388346
          %v379 = vmul.f32 %v347, 0.088388346
          %v380 = vmul.f32 %v348, 0.088388346
          %v381 = vmul.f32 %v349, 0.088388346
          %v382 = vmul.f32 %v350, 0.088388346
          %v383 = vmul.f32 %v351, 0.088388346
          %v384 = vmul.f32 %v352, 0.088388346
          %v385 = vmul.f32 %v353, 0.088388346
          %v386 = vmul.f32 %v354, 0.088388346
          %v387 = vmul.f32 %v355, 0.088388346
          %v388 = vmul.f32 %v356, 0.088388346
          %v389 = vmul.f32 %v357, 0.088388346
          %v390 = vmul.f32 %v358, 0.088388346
          %v391 = vmul.f32 %v359, 0.088388346
          %v392 = vmul.f32 %v360, 0.088388346
          %v393 = vmul.f32 %v361, 0.088388346
          %v394 = vmul.f32 %v362, 0.088388346
          %v395 = vmul.f32 %v363, 0.088388346
          %v396 = vmul.f32 %v364, 0.088388346
          %v397 = vmul.f32 %v365, 0.088388346
          %v398 = vmul.f32 %v366, 0.088388346
          %v399 = vmul.f32 %v367, 0.088388346
          %v400 = vmul.f32 %v368, 0.088388346
          %v401 = vmul.f32 %v369, 0.088388346
          %v402 = vmul.f32 %v370, 0.088388346
          %v403 = vmul.f32 %v371, 0.088388346
          %v404 = vpack.c.bf16 %v373, %v372
          %v405 = vpack.c.bf16 %v375, %v374
          %v406 = vpack.c.bf16 %v377, %v376
          %v407 = vpack.c.bf16 %v379, %v378
          %v408 = vpack.c.bf16 %v381, %v380
          %v409 = vpack.c.bf16 %v383, %v382
          %v410 = vpack.c.bf16 %v385, %v384
          %v411 = vpack.c.bf16 %v387, %v386
          %v412 = vpack.c.bf16 %v389, %v388
          %v413 = vpack.c.bf16 %v391, %v390
          %v414 = vpack.c.bf16 %v393, %v392
          %v415 = vpack.c.bf16 %v395, %v394
          %v416 = vpack.c.bf16 %v397, %v396
          %v417 = vpack.c.bf16 %v399, %v398
          %v418 = vpack.c.bf16 %v401, %v400
          %v419 = vpack.c.bf16 %v403, %v402
          %420 = vst [vmem:[#allocation2] sm:$0xff] %v404
          %421 = vst [vmem:[#allocation2 + $0x8] sm:$0xff] %v405
          %422 = vst [vmem:[#allocation2 + $0x10] sm:$0xff] %v406
          %423 = vst [vmem:[#allocation2 + $0x18] sm:$0xff] %v407
          %424 = vst [vmem:[#allocation2 + $0x20] sm:$0xff] %v408
          %425 = vst [vmem:[#allocation2 + $0x28] sm:$0xff] %v409
          %426 = vst [vmem:[#allocation2 + $0x30] sm:$0xff] %v410
          %427 = vst [vmem:[#allocation2 + $0x38] sm:$0xff] %v411
          %428 = vst [vmem:[#allocation2 + $0x40] sm:$0xff] %v412
          %429 = vst [vmem:[#allocation2 + $0x48] sm:$0xff] %v413
          %430 = vst [vmem:[#allocation2 + $0x50] sm:$0xff] %v414
          %431 = vst [vmem:[#allocation2 + $0x58] sm:$0xff] %v415
          %432 = vst [vmem:[#allocation2 + $0x60] sm:$0xff] %v416
          %433 = vst [vmem:[#allocation2 + $0x68] sm:$0xff] %v417
          %434 = vst [vmem:[#allocation2 + $0x70] sm:$0xff] %v418
          %435 = vst [vmem:[#allocation2 + $0x78] sm:$0xff] %v419
          %vm436 = vcmask 7168
          %437 = vst.msk [vmem:[#allocation3] sm:$0xff] %vm436, -1e+38
          %438 = vst.msk [vmem:[#allocation3 + $0x8] sm:$0xff] %vm436, -1e+38
          %439 = vst.msk [vmem:[#allocation3 + $0x10] sm:$0xff] %vm436, -1e+38
          %440 = vst.msk [vmem:[#allocation3 + $0x18] sm:$0xff] %vm436, -1e+38
          %441 = vst.msk [vmem:[#allocation3 + $0x20] sm:$0xff] %vm436, -1e+38
          %442 = vst.msk [vmem:[#allocation3 + $0x28] sm:$0xff] %vm436, -1e+38
          %443 = vst.msk [vmem:[#allocation3 + $0x30] sm:$0xff] %vm436, -1e+38
          %444 = vst.msk [vmem:[#allocation3 + $0x38] sm:$0xff] %vm436, -1e+38
          %445 = vst.msk [vmem:[#allocation3 + $0x40] sm:$0xff] %vm436, -1e+38
          %446 = vst.msk [vmem:[#allocation3 + $0x48] sm:$0xff] %vm436, -1e+38
          %447 = vst.msk [vmem:[#allocation3 + $0x50] sm:$0xff] %vm436, -1e+38
          %448 = vst.msk [vmem:[#allocation3 + $0x58] sm:$0xff] %vm436, -1e+38
          %449 = vst.msk [vmem:[#allocation3 + $0x60] sm:$0xff] %vm436, -1e+38
          %450 = vst.msk [vmem:[#allocation3 + $0x68] sm:$0xff] %vm436, -1e+38
          %451 = vst.msk [vmem:[#allocation3 + $0x70] sm:$0xff] %vm436, -1e+38
          %452 = vst.msk [vmem:[#allocation3 + $0x78] sm:$0xff] %vm436, -1e+38
          %453 = vst.msk [vmem:[#allocation3 + $0x80] sm:$0xff] %vm436, -1e+38
          %454 = vst.msk [vmem:[#allocation3 + $0x88] sm:$0xff] %vm436, -1e+38
          %455 = vst.msk [vmem:[#allocation3 + $0x90] sm:$0xff] %vm436, -1e+38
          %456 = vst.msk [vmem:[#allocation3 + $0x98] sm:$0xff] %vm436, -1e+38
          %457 = vst.msk [vmem:[#allocation3 + $0xa0] sm:$0xff] %vm436, -1e+38
          %458 = vst.msk [vmem:[#allocation3 + $0xa8] sm:$0xff] %vm436, -1e+38
          %459 = vst.msk [vmem:[#allocation3 + $0xb0] sm:$0xff] %vm436, -1e+38
          %460 = vst.msk [vmem:[#allocation3 + $0xb8] sm:$0xff] %vm436, -1e+38
          %461 = vst.msk [vmem:[#allocation3 + $0xc0] sm:$0xff] %vm436, -1e+38
          %462 = vst.msk [vmem:[#allocation3 + $0xc8] sm:$0xff] %vm436, -1e+38
          %463 = vst.msk [vmem:[#allocation3 + $0xd0] sm:$0xff] %vm436, -1e+38
          %464 = vst.msk [vmem:[#allocation3 + $0xd8] sm:$0xff] %vm436, -1e+38
          %465 = vst.msk [vmem:[#allocation3 + $0xe0] sm:$0xff] %vm436, -1e+38
          %466 = vst.msk [vmem:[#allocation3 + $0xe8] sm:$0xff] %vm436, -1e+38
          %467 = vst.msk [vmem:[#allocation3 + $0xf0] sm:$0xff] %vm436, -1e+38
          %468 = vst.msk [vmem:[#allocation3 + $0xf8] sm:$0xff] %vm436, -1e+38
          %469 = vst.msk [vmem:[#allocation4] sm:$0xff] %vm436, 0.0
          %470 = vst.msk [vmem:[#allocation4 + $0x8] sm:$0xff] %vm436, 0.0
          %471 = vst.msk [vmem:[#allocation4 + $0x10] sm:$0xff] %vm436, 0.0
          %472 = vst.msk [vmem:[#allocation4 + $0x18] sm:$0xff] %vm436, 0.0
          %473 = vst.msk [vmem:[#allocation4 + $0x20] sm:$0xff] %vm436, 0.0
          %474 = vst.msk [vmem:[#allocation4 + $0x28] sm:$0xff] %vm436, 0.0
          %475 = vst.msk [vmem:[#allocation4 + $0x30] sm:$0xff] %vm436, 0.0
          %476 = vst.msk [vmem:[#allocation4 + $0x38] sm:$0xff] %vm436, 0.0
          %477 = vst.msk [vmem:[#allocation4 + $0x40] sm:$0xff] %vm436, 0.0
          %478 = vst.msk [vmem:[#allocation4 + $0x48] sm:$0xff] %vm436, 0.0
          %479 = vst.msk [vmem:[#allocation4 + $0x50] sm:$0xff] %vm436, 0.0
          %480 = vst.msk [vmem:[#allocation4 + $0x58] sm:$0xff] %vm436, 0.0
          %481 = vst.msk [vmem:[#allocation4 + $0x60] sm:$0xff] %vm436, 0.0
          %482 = vst.msk [vmem:[#allocation4 + $0x68] sm:$0xff] %vm436, 0.0
          %483 = vst.msk [vmem:[#allocation4 + $0x70] sm:$0xff] %vm436, 0.0
          %484 = vst.msk [vmem:[#allocation4 + $0x78] sm:$0xff] %vm436, 0.0
          %485 = vst.msk [vmem:[#allocation4 + $0x80] sm:$0xff] %vm436, 0.0
          %486 = vst.msk [vmem:[#allocation4 + $0x88] sm:$0xff] %vm436, 0.0
          %487 = vst.msk [vmem:[#allocation4 + $0x90] sm:$0xff] %vm436, 0.0
          %488 = vst.msk [vmem:[#allocation4 + $0x98] sm:$0xff] %vm436, 0.0
          %489 = vst.msk [vmem:[#allocation4 + $0xa0] sm:$0xff] %vm436, 0.0
          %490 = vst.msk [vmem:[#allocation4 + $0xa8] sm:$0xff] %vm436, 0.0
          %491 = vst.msk [vmem:[#allocation4 + $0xb0] sm:$0xff] %vm436, 0.0
          %492 = vst.msk [vmem:[#allocation4 + $0xb8] sm:$0xff] %vm436, 0.0
          %493 = vst.msk [vmem:[#allocation4 + $0xc0] sm:$0xff] %vm436, 0.0
          %494 = vst.msk [vmem:[#allocation4 + $0xc8] sm:$0xff] %vm436, 0.0
          %495 = vst.msk [vmem:[#allocation4 + $0xd0] sm:$0xff] %vm436, 0.0
          %496 = vst.msk [vmem:[#allocation4 + $0xd8] sm:$0xff] %vm436, 0.0
          %497 = vst.msk [vmem:[#allocation4 + $0xe0] sm:$0xff] %vm436, 0.0
          %498 = vst.msk [vmem:[#allocation4 + $0xe8] sm:$0xff] %vm436, 0.0
          %499 = vst.msk [vmem:[#allocation4 + $0xf0] sm:$0xff] %vm436, 0.0
          %500 = vst.msk [vmem:[#allocation4 + $0xf8] sm:$0xff] %vm436, 0.0
          %501 = vst [vmem:[#allocation5] sm:$0xff] 0.0
          %502 = vst [vmem:[#allocation5 + $0x8] sm:$0xff] 0.0
          %503 = vst [vmem:[#allocation5 + $0x10] sm:$0xff] 0.0
          %504 = vst [vmem:[#allocation5 + $0x18] sm:$0xff] 0.0
          %505 = vst [vmem:[#allocation5 + $0x20] sm:$0xff] 0.0
          %506 = vst [vmem:[#allocation5 + $0x28] sm:$0xff] 0.0
          %507 = vst [vmem:[#allocation5 + $0x30] sm:$0xff] 0.0
          %508 = vst [vmem:[#allocation5 + $0x38] sm:$0xff] 0.0
          %509 = vst [vmem:[#allocation5 + $0x40] sm:$0xff] 0.0
          %510 = vst [vmem:[#allocation5 + $0x48] sm:$0xff] 0.0
          %511 = vst [vmem:[#allocation5 + $0x50] sm:$0xff] 0.0
          %512 = vst [vmem:[#allocation5 + $0x58] sm:$0xff] 0.0
          %513 = vst [vmem:[#allocation5 + $0x60] sm:$0xff] 0.0
          %514 = vst [vmem:[#allocation5 + $0x68] sm:$0xff] 0.0
          %515 = vst [vmem:[#allocation5 + $0x70] sm:$0xff] 0.0
          %516 = vst [vmem:[#allocation5 + $0x78] sm:$0xff] 0.0
          %517 = vst [vmem:[#allocation5 + $0x80] sm:$0xff] 0.0
          %518 = vst [vmem:[#allocation5 + $0x88] sm:$0xff] 0.0
          %519 = vst [vmem:[#allocation5 + $0x90] sm:$0xff] 0.0
          %520 = vst [vmem:[#allocation5 + $0x98] sm:$0xff] 0.0
          %521 = vst [vmem:[#allocation5 + $0xa0] sm:$0xff] 0.0
          %522 = vst [vmem:[#allocation5 + $0xa8] sm:$0xff] 0.0
          %523 = vst [vmem:[#allocation5 + $0xb0] sm:$0xff] 0.0
          %524 = vst [vmem:[#allocation5 + $0xb8] sm:$0xff] 0.0
          %525 = vst [vmem:[#allocation5 + $0xc0] sm:$0xff] 0.0
          %526 = vst [vmem:[#allocation5 + $0xc8] sm:$0xff] 0.0
          %527 = vst [vmem:[#allocation5 + $0xd0] sm:$0xff] 0.0
          %528 = vst [vmem:[#allocation5 + $0xd8] sm:$0xff] 0.0
          %529 = vst [vmem:[#allocation5 + $0xe0] sm:$0xff] 0.0
          %530 = vst [vmem:[#allocation5 + $0xe8] sm:$0xff] 0.0
          %531 = vst [vmem:[#allocation5 + $0xf0] sm:$0xff] 0.0
          %532 = vst [vmem:[#allocation5 + $0xf8] sm:$0xff] 0.0
        $region48: #{tpu_custom_call.1} parent=31 // pred_fallthru
          _
        %v533 = vld [vmem:[#allocation2] sm:$0xff]
        %v534 = vld [vmem:[#allocation2 + $0x8] sm:$0xff]
        %v535 = vld [vmem:[#allocation2 + $0x10] sm:$0xff]
        %v536 = vld [vmem:[#allocation2 + $0x18] sm:$0xff]
        %v537 = vld [vmem:[#allocation2 + $0x20] sm:$0xff]
        %v538 = vld [vmem:[#allocation2 + $0x28] sm:$0xff]
        %v539 = vld [vmem:[#allocation2 + $0x30] sm:$0xff]
        %v540 = vld [vmem:[#allocation2 + $0x38] sm:$0xff]
        %v541 = vld [vmem:[#allocation2 + $0x40] sm:$0xff]
        %v542 = vld [vmem:[#allocation2 + $0x48] sm:$0xff]
        %v543 = vld [vmem:[#allocation2 + $0x50] sm:$0xff]
        %v544 = vld [vmem:[#allocation2 + $0x58] sm:$0xff]
        %v545 = vld [vmem:[#allocation2 + $0x60] sm:$0xff]
        %v546 = vld [vmem:[#allocation2 + $0x68] sm:$0xff]
        %v547 = vld [vmem:[#allocation2 + $0x70] sm:$0xff]
        %v548 = vld [vmem:[#allocation2 + $0x78] sm:$0xff]
        %v549 = vld [vmem:[%s257] sm:$0xf]
        %v550 = vld [vmem:[%s257 + $0x4] sm:$0xf]
        %v551 = vld [vmem:[%s257 + $0x8] sm:$0xf]
        %v552 = vld [vmem:[%s257 + $0xc] sm:$0xf]
        %v553 = vld [vmem:[%s257 + $0x10] sm:$0xf]
        %v554 = vld [vmem:[%s257 + $0x14] sm:$0xf]
        %v555 = vld [vmem:[%s257 + $0x18] sm:$0xf]
        %v556 = vld [vmem:[%s257 + $0x1c] sm:$0xf]
        %v557 = vld [vmem:[%s257 + $0x20] sm:$0xf]
        %v558 = vld [vmem:[%s257 + $0x24] sm:$0xf]
        %v559 = vld [vmem:[%s257 + $0x28] sm:$0xf]
        %v560 = vld [vmem:[%s257 + $0x2c] sm:$0xf]
        %v561 = vld [vmem:[%s257 + $0x30] sm:$0xf]
        %v562 = vld [vmem:[%s257 + $0x34] sm:$0xf]
        %v563 = vld [vmem:[%s257 + $0x38] sm:$0xf]
        %v564 = vld [vmem:[%s257 + $0x3c] sm:$0xf]
        %v565 = vld [vmem:[%s257 + $0x40] sm:$0xf]
        %v566 = vld [vmem:[%s257 + $0x44] sm:$0xf]
        %v567 = vld [vmem:[%s257 + $0x48] sm:$0xf]
        %v568 = vld [vmem:[%s257 + $0x4c] sm:$0xf]
        %v569 = vld [vmem:[%s257 + $0x50] sm:$0xf]
        %v570 = vld [vmem:[%s257 + $0x54] sm:$0xf]
        %v571 = vld [vmem:[%s257 + $0x58] sm:$0xf]
        %v572 = vld [vmem:[%s257 + $0x5c] sm:$0xf]
        %v573 = vld [vmem:[%s257 + $0x60] sm:$0xf]
        %v574 = vld [vmem:[%s257 + $0x64] sm:$0xf]
        %v575 = vld [vmem:[%s257 + $0x68] sm:$0xf]
        %v576 = vld [vmem:[%s257 + $0x6c] sm:$0xf]
        %v577 = vld [vmem:[%s257 + $0x70] sm:$0xf]
        %v578 = vld [vmem:[%s257 + $0x74] sm:$0xf]
        %v579 = vld [vmem:[%s257 + $0x78] sm:$0xf]
        %v580 = vld [vmem:[%s257 + $0x7c] sm:$0xf]
        %v613 = vunpack.c.l.b16 %v549
        %v614 = vunpack.c.l.b16 %v550
        %v615 = vunpack.c.l.b16 %v551
        %v616 = vunpack.c.l.b16 %v552
        %v617 = vunpack.c.l.b16 %v553
        %v618 = vunpack.c.l.b16 %v554
        %v619 = vunpack.c.l.b16 %v555
        %v620 = vunpack.c.l.b16 %v556
        %v621 = vunpack.c.l.b16 %v557
        %v622 = vunpack.c.l.b16 %v558
        %v623 = vunpack.c.l.b16 %v559
        %v624 = vunpack.c.l.b16 %v560
        %v625 = vunpack.c.l.b16 %v561
        %v626 = vunpack.c.l.b16 %v562
        %v627 = vunpack.c.l.b16 %v563
        %v628 = vunpack.c.l.b16 %v564
        %v629 = vunpack.c.l.b16 %v565
        %v630 = vunpack.c.l.b16 %v566
        %v631 = vunpack.c.l.b16 %v567
        %v632 = vunpack.c.l.b16 %v568
        %v633 = vunpack.c.l.b16 %v569
        %v634 = vunpack.c.l.b16 %v570
        %v635 = vunpack.c.l.b16 %v571
        %v636 = vunpack.c.l.b16 %v572
        %v637 = vunpack.c.l.b16 %v573
        %v638 = vunpack.c.l.b16 %v574
        %v639 = vunpack.c.l.b16 %v575
        %v640 = vunpack.c.l.b16 %v576
        %v641 = vunpack.c.l.b16 %v577
        %v642 = vunpack.c.l.b16 %v578
        %v643 = vunpack.c.l.b16 %v579
        %v644 = vunpack.c.l.b16 %v580
        %v645 = vpack.c.b16 %v614, %v613
        %v646 = vpack.c.b16 %v616, %v615
        %v647 = vpack.c.b16 %v618, %v617
        %v648 = vpack.c.b16 %v620, %v619
        %v649 = vpack.c.b16 %v622, %v621
        %v650 = vpack.c.b16 %v624, %v623
        %v651 = vpack.c.b16 %v626, %v625
        %v652 = vpack.c.b16 %v628, %v627
        %v653 = vpack.c.b16 %v630, %v629
        %v654 = vpack.c.b16 %v632, %v631
        %v655 = vpack.c.b16 %v634, %v633
        %v656 = vpack.c.b16 %v636, %v635
        %v657 = vpack.c.b16 %v638, %v637
        %v658 = vpack.c.b16 %v640, %v639
        %v659 = vpack.c.b16 %v642, %v641
        %v660 = vpack.c.b16 %v644, %v643
        %677 = vmatprep.subr.bf16.mxu0 0
        %678 = vmatpush1.bf16.xpose.msra.mxu0 %v645
        %679 = vmatprep.subr.bf16.mxu0 0
        %680 = vmatpush1.bf16.xpose.msra.mxu0 %v646
        %681 = vmatprep.subr.bf16.mxu0 0
        %682 = vmatpush1.bf16.xpose.msra.mxu0 %v647
        %683 = vmatprep.subr.bf16.mxu0 0
        %684 = vmatpush1.bf16.xpose.msra.mxu0 %v648
        %685 = vmatprep.subr.bf16.mxu0 0
        %686 = vmatpush1.bf16.xpose.msra.mxu0 %v649
        %687 = vmatprep.subr.bf16.mxu0 0
        %688 = vmatpush1.bf16.xpose.msra.mxu0 %v650
        %689 = vmatprep.subr.bf16.mxu0 0
        %690 = vmatpush1.bf16.xpose.msra.mxu0 %v651
        %691 = vmatprep.subr.bf16.mxu0 0
        %692 = vmatpush1.bf16.xpose.msra.mxu0 %v652
        %693 = vmatprep.subr.bf16.mxu0 0
        %694 = vmatpush1.bf16.xpose.msra.mxu0 %v653
        %695 = vmatprep.subr.bf16.mxu0 0
        %696 = vmatpush1.bf16.xpose.msra.mxu0 %v654
        %697 = vmatprep.subr.bf16.mxu0 0
        %698 = vmatpush1.bf16.xpose.msra.mxu0 %v655
        %699 = vmatprep.subr.bf16.mxu0 0
        %700 = vmatpush1.bf16.xpose.msra.mxu0 %v656
        %701 = vmatprep.subr.bf16.mxu0 0
        %702 = vmatpush1.bf16.xpose.msra.mxu0 %v657
        %703 = vmatprep.subr.bf16.mxu0 0
        %704 = vmatpush1.bf16.xpose.msra.mxu0 %v658
        %705 = vmatprep.subr.bf16.mxu0 0
        %706 = vmatpush1.bf16.xpose.msra.mxu0 %v659
        %707 = vmatprep.subr.bf16.mxu0 0
        %708 = vmatpush1.bf16.xpose.msra.mxu0 %v660
        %709 = vmatprep.mubr.bf16.mxu0 0
        %710 = vmatmul.mubr.bf16.gmra.mrb[0].mxu0 %v533
        %v711 = vpop.f32.mrb[0].mxu0
        %v712 = vadd.f32 0.0, %v711
        %v713 = vpop.f32.mrb[0].mxu0
        %v714 = vadd.f32 0.0, %v713
        %v715 = vpop.f32.mrb[0].mxu0
        %v716 = vadd.f32 0.0, %v715
        %v717 = vpop.f32.mrb[0].mxu0
        %v718 = vadd.f32 0.0, %v717
        %719 = vmatprep.mubr.bf16.mxu0 0
        %720 = vmatmul.mubr.bf16.gmra.mrb[0].mxu0 %v534
        %v721 = vpop.f32.mrb[0].mxu0
        %v722 = vadd.f32 0.0, %v721
        %v723 = vpop.f32.mrb[0].mxu0
        %v724 = vadd.f32 0.0, %v723
        %v725 = vpop.f32.mrb[0].mxu0
        %v726 = vadd.f32 0.0, %v725
        %v727 = vpop.f32.mrb[0].mxu0
        %v728 = vadd.f32 0.0, %v727
        %729 = vmatprep.mubr.bf16.mxu0 0
        %730 = vmatmul.mubr.bf16.gmra.mrb[0].mxu0 %v535
        %v731 = vpop.f32.mrb[0].mxu0
        %v732 = vadd.f32 0.0, %v731
        %v733 = vpop.f32.mrb[0].mxu0
        %v734 = vadd.f32 0.0, %v733
        %v735 = vpop.f32.mrb[0].mxu0
        %v736 = vadd.f32 0.0, %v735
        %v737 = vpop.f32.mrb[0].mxu0
        %v738 = vadd.f32 0.0, %v737
        %739 = vmatprep.mubr.bf16.mxu0 0
        %740 = vmatmul.mubr.bf16.gmra.mrb[0].mxu0 %v536
        %v741 = vpop.f32.mrb[0].mxu0
        %v742 = vadd.f32 0.0, %v741
        %v743 = vpop.f32.mrb[0].mxu0
        %v744 = vadd.f32 0.0, %v743
        %v745 = vpop.f32.mrb[0].mxu0
        %v746 = vadd.f32 0.0, %v745
        %v747 = vpop.f32.mrb[0].mxu0
        %v748 = vadd.f32 0.0, %v747
        %749 = vmatprep.mubr.bf16.mxu0 0
        %750 = vmatmul.mubr.bf16.gmra.mrb[0].mxu0 %v537
        %v751 = vpop.f32.mrb[0].mxu0
        %v752 = vadd.f32 0.0, %v751
        %v753 = vpop.f32.mrb[0].mxu0
        %v754 = vadd.f32 0.0, %v753
        %v755 = vpop.f32.mrb[0].mxu0
        %v756 = vadd.f32 0.0, %v755
        %v757 = vpop.f32.mrb[0].mxu0
        %v758 = vadd.f32 0.0, %v757
        %759 = vmatprep.mubr.bf16.mxu0 0
        %760 = vmatmul.mubr.bf16.gmra.mrb[0].mxu0 %v538
        %v761 = vpop.f32.mrb[0].mxu0
        %v762 = vadd.f32 0.0, %v761
        %v763 = vpop.f32.mrb[0].mxu0
        %v764 = vadd.f32 0.0, %v763
        %v765 = vpop.f32.mrb[0].mxu0
        %v766 = vadd.f32 0.0, %v765
        %v767 = vpop.f32.mrb[0].mxu0
        %v768 = vadd.f32 0.0, %v767
        %769 = vmatprep.mubr.bf16.mxu0 0
        %770 = vmatmul.mubr.bf16.gmra.mrb[0].mxu0 %v539
        %v771 = vpop.f32.mrb[0].mxu0
        %v772 = vadd.f32 0.0, %v771
        %v773 = vpop.f32.mrb[0].mxu0
        %v774 = vadd.f32 0.0, %v773
        %v775 = vpop.f32.mrb[0].mxu0
        %v776 = vadd.f32 0.0, %v775
        %v777 = vpop.f32.mrb[0].mxu0
        %v778 = vadd.f32 0.0, %v777
        %779 = vmatprep.mubr.bf16.mxu0 0
        %780 = vmatmul.mubr.bf16.gmra.mrb[0].mxu0 %v540
        %v781 = vpop.f32.mrb[0].mxu0
        %v782 = vadd.f32 0.0, %v781
        %v783 = vpop.f32.mrb[0].mxu0
        %v784 = vadd.f32 0.0, %v783
        %v785 = vpop.f32.mrb[0].mxu0
        %v786 = vadd.f32 0.0, %v785
        %v787 = vpop.f32.mrb[0].mxu0
        %v788 = vadd.f32 0.0, %v787
        %789 = vmatprep.mubr.bf16.mxu0 0
        %790 = vmatmul.mubr.bf16.gmra.mrb[0].mxu0 %v541
        %v791 = vpop.f32.mrb[0].mxu0
        %v792 = vadd.f32 0.0, %v791
        %v793 = vpop.f32.mrb[0].mxu0
        %v794 = vadd.f32 0.0, %v793
        %v795 = vpop.f32.mrb[0].mxu0
        %v796 = vadd.f32 0.0, %v795
        %v797 = vpop.f32.mrb[0].mxu0
        %v798 = vadd.f32 0.0, %v797
        %799 = vmatprep.mubr.bf16.mxu0 0
        %800 = vmatmul.mubr.bf16.gmra.mrb[0].mxu0 %v542
        %v801 = vpop.f32.mrb[0].mxu0
        %v802 = vadd.f32 0.0, %v801
        %v803 = vpop.f32.mrb[0].mxu0
        %v804 = vadd.f32 0.0, %v803
        %v805 = vpop.f32.mrb[0].mxu0
        %v806 = vadd.f32 0.0, %v805
        %v807 = vpop.f32.mrb[0].mxu0
        %v808 = vadd.f32 0.0, %v807
        %809 = vmatprep.mubr.bf16.mxu0 0
        %810 = vmatmul.mubr.bf16.gmra.mrb[0].mxu0 %v543
        %v811 = vpop.f32.mrb[0].mxu0
        %v812 = vadd.f32 0.0, %v811
        %v813 = vpop.f32.mrb[0].mxu0
        %v814 = vadd.f32 0.0, %v813
        %v815 = vpop.f32.mrb[0].mxu0
        %v816 = vadd.f32 0.0, %v815
        %v817 = vpop.f32.mrb[0].mxu0
        %v818 = vadd.f32 0.0, %v817
        %819 = vmatprep.mubr.bf16.mxu0 0
        %820 = vmatmul.mubr.bf16.gmra.mrb[0].mxu0 %v544
        %v821 = vpop.f32.mrb[0].mxu0
        %v822 = vadd.f32 0.0, %v821
        %v823 = vpop.f32.mrb[0].mxu0
        %v824 = vadd.f32 0.0, %v823
        %v825 = vpop.f32.mrb[0].mxu0
        %v826 = vadd.f32 0.0, %v825
        %v827 = vpop.f32.mrb[0].mxu0
        %v828 = vadd.f32 0.0, %v827
        %829 = vmatprep.mubr.bf16.mxu0 0
        %830 = vmatmul.mubr.bf16.gmra.mrb[0].mxu0 %v545
        %v831 = vpop.f32.mrb[0].mxu0
        %v832 = vadd.f32 0.0, %v831
        %v833 = vpop.f32.mrb[0].mxu0
        %v834 = vadd.f32 0.0, %v833
        %v835 = vpop.f32.mrb[0].mxu0
        %v836 = vadd.f32 0.0, %v835
        %v837 = vpop.f32.mrb[0].mxu0
        %v838 = vadd.f32 0.0, %v837
        %839 = vmatprep.mubr.bf16.mxu0 0
        %840 = vmatmul.mubr.bf16.gmra.mrb[0].mxu0 %v546
        %v841 = vpop.f32.mrb[0].mxu0
        %v842 = vadd.f32 0.0, %v841
        %v843 = vpop.f32.mrb[0].mxu0
        %v844 = vadd.f32 0.0, %v843
        %v845 = vpop.f32.mrb[0].mxu0
        %v846 = vadd.f32 0.0, %v845
        %v847 = vpop.f32.mrb[0].mxu0
        %v848 = vadd.f32 0.0, %v847
        %849 = vmatprep.mubr.bf16.mxu0 0
        %850 = vmatmul.mubr.bf16.gmra.mrb[0].mxu0 %v547
        %v851 = vpop.f32.mrb[0].mxu0
        %v852 = vadd.f32 0.0, %v851
        %v853 = vpop.f32.mrb[0].mxu0
        %v854 = vadd.f32 0.0, %v853
        %v855 = vpop.f32.mrb[0].mxu0
        %v856 = vadd.f32 0.0, %v855
        %v857 = vpop.f32.mrb[0].mxu0
        %v858 = vadd.f32 0.0, %v857
        %859 = vmatprep.mubr.bf16.mxu0 0
        %860 = vmatmul.mubr.bf16.gmra.mrb[0].mxu0 %v548
        %v861 = vpop.f32.mrb[0].mxu0
        %v862 = vadd.f32 0.0, %v861
        %v863 = vpop.f32.mrb[0].mxu0
        %v864 = vadd.f32 0.0, %v863
        %v865 = vpop.f32.mrb[0].mxu0
        %v866 = vadd.f32 0.0, %v865
        %v867 = vpop.f32.mrb[0].mxu0
        %v868 = vadd.f32 0.0, %v867
        %869 = vdwg.mxu0
        %v870 = vld [vmem:[#allocation3] sm:$0xff]
        %v871 = vld [vmem:[#allocation3 + $0x8] sm:$0xff]
        %v872 = vld [vmem:[#allocation3 + $0x10] sm:$0xff]
        %v873 = vld [vmem:[#allocation3 + $0x18] sm:$0xff]
        %v874 = vld [vmem:[#allocation3 + $0x20] sm:$0xff]
        %v875 = vld [vmem:[#allocation3 + $0x28] sm:$0xff]
        %v876 = vld [vmem:[#allocation3 + $0x30] sm:$0xff]
        %v877 = vld [vmem:[#allocation3 + $0x38] sm:$0xff]
        %v878 = vld [vmem:[#allocation3 + $0x40] sm:$0xff]
        %v879 = vld [vmem:[#allocation3 + $0x48] sm:$0xff]
        %v880 = vld [vmem:[#allocation3 + $0x50] sm:$0xff]
        %v881 = vld [vmem:[#allocation3 + $0x58] sm:$0xff]
        %v882 = vld [vmem:[#allocation3 + $0x60] sm:$0xff]
        %v883 = vld [vmem:[#allocation3 + $0x68] sm:$0xff]
        %v884 = vld [vmem:[#allocation3 + $0x70] sm:$0xff]
        %v885 = vld [vmem:[#allocation3 + $0x78] sm:$0xff]
        %v886 = vld [vmem:[#allocation3 + $0x80] sm:$0xff]
        %v887 = vld [vmem:[#allocation3 + $0x88] sm:$0xff]
        %v888 = vld [vmem:[#allocation3 + $0x90] sm:$0xff]
        %v889 = vld [vmem:[#allocation3 + $0x98] sm:$0xff]
        %v890 = vld [vmem:[#allocation3 + $0xa0] sm:$0xff]
        %v891 = vld [vmem:[#allocation3 + $0xa8] sm:$0xff]
        %v892 = vld [vmem:[#allocation3 + $0xb0] sm:$0xff]
        %v893 = vld [vmem:[#allocation3 + $0xb8] sm:$0xff]
        %v894 = vld [vmem:[#allocation3 + $0xc0] sm:$0xff]
        %v895 = vld [vmem:[#allocation3 + $0xc8] sm:$0xff]
        %v896 = vld [vmem:[#allocation3 + $0xd0] sm:$0xff]
        %v897 = vld [vmem:[#allocation3 + $0xd8] sm:$0xff]
        %v898 = vld [vmem:[#allocation3 + $0xe0] sm:$0xff]
        %v899 = vld [vmem:[#allocation3 + $0xe8] sm:$0xff]
        %v900 = vld [vmem:[#allocation3 + $0xf0] sm:$0xff]
        %v901 = vld [vmem:[#allocation3 + $0xf8] sm:$0xff]
        %v902 = vmax.f32 %v712, %v714
        %903 = vmax.xlane.f32.xlu0 %v902
        %v904 = vpop.xlane.xlu0 %903
        %v905 = vmax.f32 %v716, %v718
        %906 = vmax.xlane.f32.xlu0 %v905
        %v907 = vpop.xlane.xlu0 %906
        %v908 = vmax.f32 %v722, %v724
        %909 = vmax.xlane.f32.xlu0 %v908
        %v910 = vpop.xlane.xlu0 %909
        %v911 = vmax.f32 %v726, %v728
        %912 = vmax.xlane.f32.xlu0 %v911
        %v913 = vpop.xlane.xlu0 %912
        %v914 = vmax.f32 %v732, %v734
        %915 = vmax.xlane.f32.xlu0 %v914
        %v916 = vpop.xlane.xlu0 %915
        %v917 = vmax.f32 %v736, %v738
        %918 = vmax.xlane.f32.xlu0 %v917
        %v919 = vpop.xlane.xlu0 %918
        %v920 = vmax.f32 %v742, %v744
        %921 = vmax.xlane.f32.xlu0 %v920
        %v922 = vpop.xlane.xlu0 %921
        %v923 = vmax.f32 %v746, %v748
        %924 = vmax.xlane.f32.xlu0 %v923
        %v925 = vpop.xlane.xlu0 %924
        %v926 = vmax.f32 %v752, %v754
        %927 = vmax.xlane.f32.xlu0 %v926
        %v928 = vpop.xlane.xlu0 %927
        %v929 = vmax.f32 %v756, %v758
        %930 = vmax.xlane.f32.xlu0 %v929
        %v931 = vpop.xlane.xlu0 %930
        %v932 = vmax.f32 %v762, %v764
        %933 = vmax.xlane.f32.xlu0 %v932
        %v934 = vpop.xlane.xlu0 %933
        %v935 = vmax.f32 %v766, %v768
        %936 = vmax.xlane.f32.xlu0 %v935
        %v937 = vpop.xlane.xlu0 %936
        %v938 = vmax.f32 %v772, %v774
        %939 = vmax.xlane.f32.xlu0 %v938
        %v940 = vpop.xlane.xlu0 %939
        %v941 = vmax.f32 %v776, %v778
        %942 = vmax.xlane.f32.xlu0 %v941
        %v943 = vpop.xlane.xlu0 %942
        %v944 = vmax.f32 %v782, %v784
        %945 = vmax.xlane.f32.xlu0 %v944
        %v946 = vpop.xlane.xlu0 %945
        %v947 = vmax.f32 %v786, %v788
        %948 = vmax.xlane.f32.xlu0 %v947
        %v949 = vpop.xlane.xlu0 %948
        %v950 = vmax.f32 %v792, %v794
        %951 = vmax.xlane.f32.xlu0 %v950
        %v952 = vpop.xlane.xlu0 %951
        %v953 = vmax.f32 %v796, %v798
        %954 = vmax.xlane.f32.xlu0 %v953
        %v955 = vpop.xlane.xlu0 %954
        %v956 = vmax.f32 %v802, %v804
        %957 = vmax.xlane.f32.xlu0 %v956
        %v958 = vpop.xlane.xlu0 %957
        %v959 = vmax.f32 %v806, %v808
        %960 = vmax.xlane.f32.xlu0 %v959
        %v961 = vpop.xlane.xlu0 %960
        %v962 = vmax.f32 %v812, %v814
        %963 = vmax.xlane.f32.xlu0 %v962
        %v964 = vpop.xlane.xlu0 %963
        %v965 = vmax.f32 %v816, %v818
        %966 = vmax.xlane.f32.xlu0 %v965
        %v967 = vpop.xlane.xlu0 %966
        %v968 = vmax.f32 %v822, %v824
        %969 = vmax.xlane.f32.xlu0 %v968
        %v970 = vpop.xlane.xlu0 %969
        %v971 = vmax.f32 %v826, %v828
        %972 = vmax.xlane.f32.xlu0 %v971
        %v973 = vpop.xlane.xlu0 %972
        %v974 = vmax.f32 %v832, %v834
        %975 = vmax.xlane.f32.xlu0 %v974
        %v976 = vpop.xlane.xlu0 %975
        %v977 = vmax.f32 %v836, %v838
        %978 = vmax.xlane.f32.xlu0 %v977
        %v979 = vpop.xlane.xlu0 %978
        %v980 = vmax.f32 %v842, %v844
        %981 = vmax.xlane.f32.xlu0 %v980
        %v982 = vpop.xlane.xlu0 %981
        %v983 = vmax.f32 %v846, %v848
        %984 = vmax.xlane.f32.xlu0 %v983
        %v985 = vpop.xlane.xlu0 %984
        %v986 = vmax.f32 %v852, %v854
        %987 = vmax.xlane.f32.xlu0 %v986
        %v988 = vpop.xlane.xlu0 %987
        %v989 = vmax.f32 %v856, %v858
        %990 = vmax.xlane.f32.xlu0 %v989
        %v991 = vpop.xlane.xlu0 %990
        %v992 = vmax.f32 %v862, %v864
        %993 = vmax.xlane.f32.xlu0 %v992
        %v994 = vpop.xlane.xlu0 %993
        %v995 = vmax.f32 %v866, %v868
        %996 = vmax.xlane.f32.xlu0 %v995
        %v997 = vpop.xlane.xlu0 %996
        %v998 = vmax.f32 %v870, %v904
        %v999 = vmax.f32 %v871, %v907
        %v1000 = vmax.f32 %v872, %v910
        %v1001 = vmax.f32 %v873, %v913
        %v1002 = vmax.f32 %v874, %v916
        %v1003 = vmax.f32 %v875, %v919
        %v1004 = vmax.f32 %v876, %v922
        %v1005 = vmax.f32 %v877, %v925
        %v1006 = vmax.f32 %v878, %v928
        %v1007 = vmax.f32 %v879, %v931
        %v1008 = vmax.f32 %v880, %v934
        %v1009 = vmax.f32 %v881, %v937
        %v1010 = vmax.f32 %v882, %v940
        %v1011 = vmax.f32 %v883, %v943
        %v1012 = vmax.f32 %v884, %v946
        %v1013 = vmax.f32 %v885, %v949
        %v1014 = vmax.f32 %v886, %v952
        %v1015 = vmax.f32 %v887, %v955
        %v1016 = vmax.f32 %v888, %v958
        %v1017 = vmax.f32 %v889, %v961
        %v1018 = vmax.f32 %v890, %v964
        %v1019 = vmax.f32 %v891, %v967
        %v1020 = vmax.f32 %v892, %v970
        %v1021 = vmax.f32 %v893, %v973
        %v1022 = vmax.f32 %v894, %v976
        %v1023 = vmax.f32 %v895, %v979
        %v1024 = vmax.f32 %v896, %v982
        %v1025 = vmax.f32 %v897, %v985
        %v1026 = vmax.f32 %v898, %v988
        %v1027 = vmax.f32 %v899, %v991
        %v1028 = vmax.f32 %v900, %v994
        %v1029 = vmax.f32 %v901, %v997
        %v1030 = vsub.f32 %v870, %v998
        %v1031 = vsub.f32 %v871, %v999
        %v1032 = vsub.f32 %v872, %v1000
        %v1033 = vsub.f32 %v873, %v1001
        %v1034 = vsub.f32 %v874, %v1002
        %v1035 = vsub.f32 %v875, %v1003
        %v1036 = vsub.f32 %v876, %v1004
        %v1037 = vsub.f32 %v877, %v1005
        %v1038 = vsub.f32 %v878, %v1006
        %v1039 = vsub.f32 %v879, %v1007
        %v1040 = vsub.f32 %v880, %v1008
        %v1041 = vsub.f32 %v881, %v1009
        %v1042 = vsub.f32 %v882, %v1010
        %v1043 = vsub.f32 %v883, %v1011
        %v1044 = vsub.f32 %v884, %v1012
        %v1045 = vsub.f32 %v885, %v1013
        %v1046 = vsub.f32 %v886, %v1014
        %v1047 = vsub.f32 %v887, %v1015
        %v1048 = vsub.f32 %v888, %v1016
        %v1049 = vsub.f32 %v889, %v1017
        %v1050 = vsub.f32 %v890, %v1018
        %v1051 = vsub.f32 %v891, %v1019
        %v1052 = vsub.f32 %v892, %v1020
        %v1053 = vsub.f32 %v893, %v1021
        %v1054 = vsub.f32 %v894, %v1022
        %v1055 = vsub.f32 %v895, %v1023
        %v1056 = vsub.f32 %v896, %v1024
        %v1057 = vsub.f32 %v897, %v1025
        %v1058 = vsub.f32 %v898, %v1026
        %v1059 = vsub.f32 %v899, %v1027
        %v1060 = vsub.f32 %v900, %v1028
        %v1061 = vsub.f32 %v901, %v1029
        %v1062 = vmul.f32 %v1030, 1.442695
        %v1063 = vpow.pop %v1062
        %v1064 = vmul.f32 %v1031, 1.442695
        %v1065 = vpow.pop %v1064
        %v1066 = vmul.f32 %v1032, 1.442695
        %v1067 = vpow.pop %v1066
        %v1068 = vmul.f32 %v1033, 1.442695
        %v1069 = vpow.pop %v1068
        %v1070 = vmul.f32 %v1034, 1.442695
        %v1071 = vpow.pop %v1070
        %v1072 = vmul.f32 %v1035, 1.442695
        %v1073 = vpow.pop %v1072
        %v1074 = vmul.f32 %v1036, 1.442695
        %v1075 = vpow.pop %v1074
        %v1076 = vmul.f32 %v1037, 1.442695
        %v1077 = vpow.pop %v1076
        %v1078 = vmul.f32 %v1038, 1.442695
        %v1079 = vpow.pop %v1078
        %v1080 = vmul.f32 %v1039, 1.442695
        %v1081 = vpow.pop %v1080
        %v1082 = vmul.f32 %v1040, 1.442695
        %v1083 = vpow.pop %v1082
        %v1084 = vmul.f32 %v1041, 1.442695
        %v1085 = vpow.pop %v1084
        %v1086 = vmul.f32 %v1042, 1.442695
        %v1087 = vpow.pop %v1086
        %v1088 = vmul.f32 %v1043, 1.442695
        %v1089 = vpow.pop %v1088
        %v1090 = vmul.f32 %v1044, 1.442695
        %v1091 = vpow.pop %v1090
        %v1092 = vmul.f32 %v1045, 1.442695
        %v1093 = vpow.pop %v1092
        %v1094 = vmul.f32 %v1046, 1.442695
        %v1095 = vpow.pop %v1094
        %v1096 = vmul.f32 %v1047, 1.442695
        %v1097 = vpow.pop %v1096
        %v1098 = vmul.f32 %v1048, 1.442695
        %v1099 = vpow.pop %v1098
        %v1100 = vmul.f32 %v1049, 1.442695
        %v1101 = vpow.pop %v1100
        %v1102 = vmul.f32 %v1050, 1.442695
        %v1103 = vpow.pop %v1102
        %v1104 = vmul.f32 %v1051, 1.442695
        %v1105 = vpow.pop %v1104
        %v1106 = vmul.f32 %v1052, 1.442695
        %v1107 = vpow.pop %v1106
        %v1108 = vmul.f32 %v1053, 1.442695
        %v1109 = vpow.pop %v1108
        %v1110 = vmul.f32 %v1054, 1.442695
        %v1111 = vpow.pop %v1110
        %v1112 = vmul.f32 %v1055, 1.442695
        %v1113 = vpow.pop %v1112
        %v1114 = vmul.f32 %v1056, 1.442695
        %v1115 = vpow.pop %v1114
        %v1116 = vmul.f32 %v1057, 1.442695
        %v1117 = vpow.pop %v1116
        %v1118 = vmul.f32 %v1058, 1.442695
        %v1119 = vpow.pop %v1118
        %v1120 = vmul.f32 %v1059, 1.442695
        %v1121 = vpow.pop %v1120
        %v1122 = vmul.f32 %v1060, 1.442695
        %v1123 = vpow.pop %v1122
        %v1124 = vmul.f32 %v1061, 1.442695
        %v1125 = vpow.pop %v1124
        %1127 = vset.pattern.permute.xlu0 0
        %1128 = vperm.xlu0 %1127, %v998
        %v1129 = vpop.permute.xlu0 %1128
        %1132 = vset.pattern.permute.xlu0 0
        %1133 = vperm.xlu0 %1132, %v999
        %v1134 = vpop.permute.xlu0 %1133
        %1137 = vset.pattern.permute.xlu0 0
        %1138 = vperm.xlu0 %1137, %v1000
        %v1139 = vpop.permute.xlu0 %1138
        %1142 = vset.pattern.permute.xlu0 0
        %1143 = vperm.xlu0 %1142, %v1001
        %v1144 = vpop.permute.xlu0 %1143
        %1147 = vset.pattern.permute.xlu0 0
        %1148 = vperm.xlu0 %1147, %v1002
        %v1149 = vpop.permute.xlu0 %1148
        %1152 = vset.pattern.permute.xlu0 0
        %1153 = vperm.xlu0 %1152, %v1003
        %v1154 = vpop.permute.xlu0 %1153
        %1157 = vset.pattern.permute.xlu0 0
        %1158 = vperm.xlu0 %1157, %v1004
        %v1159 = vpop.permute.xlu0 %1158
        %1162 = vset.pattern.permute.xlu0 0
        %1163 = vperm.xlu0 %1162, %v1005
        %v1164 = vpop.permute.xlu0 %1163
        %1167 = vset.pattern.permute.xlu0 0
        %1168 = vperm.xlu0 %1167, %v1006
        %v1169 = vpop.permute.xlu0 %1168
        %1172 = vset.pattern.permute.xlu0 0
        %1173 = vperm.xlu0 %1172, %v1007
        %v1174 = vpop.permute.xlu0 %1173
        %1177 = vset.pattern.permute.xlu0 0
        %1178 = vperm.xlu0 %1177, %v1008
        %v1179 = vpop.permute.xlu0 %1178
        %1182 = vset.pattern.permute.xlu0 0
        %1183 = vperm.xlu0 %1182, %v1009
        %v1184 = vpop.permute.xlu0 %1183
        %1187 = vset.pattern.permute.xlu0 0
        %1188 = vperm.xlu0 %1187, %v1010
        %v1189 = vpop.permute.xlu0 %1188
        %1192 = vset.pattern.permute.xlu0 0
        %1193 = vperm.xlu0 %1192, %v1011
        %v1194 = vpop.permute.xlu0 %1193
        %1197 = vset.pattern.permute.xlu0 0
        %1198 = vperm.xlu0 %1197, %v1012
        %v1199 = vpop.permute.xlu0 %1198
        %1202 = vset.pattern.permute.xlu0 0
        %1203 = vperm.xlu0 %1202, %v1013
        %v1204 = vpop.permute.xlu0 %1203
        %1207 = vset.pattern.permute.xlu0 0
        %1208 = vperm.xlu0 %1207, %v1014
        %v1209 = vpop.permute.xlu0 %1208
        %1212 = vset.pattern.permute.xlu0 0
        %1213 = vperm.xlu0 %1212, %v1015
        %v1214 = vpop.permute.xlu0 %1213
        %1217 = vset.pattern.permute.xlu0 0
        %1218 = vperm.xlu0 %1217, %v1016
        %v1219 = vpop.permute.xlu0 %1218
        %1222 = vset.pattern.permute.xlu0 0
        %1223 = vperm.xlu0 %1222, %v1017
        %v1224 = vpop.permute.xlu0 %1223
        %1227 = vset.pattern.permute.xlu0 0
        %1228 = vperm.xlu0 %1227, %v1018
        %v1229 = vpop.permute.xlu0 %1228
        %1232 = vset.pattern.permute.xlu0 0
        %1233 = vperm.xlu0 %1232, %v1019
        %v1234 = vpop.permute.xlu0 %1233
        %1237 = vset.pattern.permute.xlu0 0
        %1238 = vperm.xlu0 %1237, %v1020
        %v1239 = vpop.permute.xlu0 %1238
        %1242 = vset.pattern.permute.xlu0 0
        %1243 = vperm.xlu0 %1242, %v1021
        %v1244 = vpop.permute.xlu0 %1243
        %1247 = vset.pattern.permute.xlu0 0
        %1248 = vperm.xlu0 %1247, %v1022
        %v1249 = vpop.permute.xlu0 %1248
        %1252 = vset.pattern.permute.xlu0 0
        %1253 = vperm.xlu0 %1252, %v1023
        %v1254 = vpop.permute.xlu0 %1253
        %1257 = vset.pattern.permute.xlu0 0
        %1258 = vperm.xlu0 %1257, %v1024
        %v1259 = vpop.permute.xlu0 %1258
        %1262 = vset.pattern.permute.xlu0 0
        %1263 = vperm.xlu0 %1262, %v1025
        %v1264 = vpop.permute.xlu0 %1263
        %1267 = vset.pattern.permute.xlu0 0
        %1268 = vperm.xlu0 %1267, %v1026
        %v1269 = vpop.permute.xlu0 %1268
        %1272 = vset.pattern.permute.xlu0 0
        %1273 = vperm.xlu0 %1272, %v1027
        %v1274 = vpop.permute.xlu0 %1273
        %1277 = vset.pattern.permute.xlu0 0
        %1278 = vperm.xlu0 %1277, %v1028
        %v1279 = vpop.permute.xlu0 %1278
        %1282 = vset.pattern.permute.xlu0 0
        %1283 = vperm.xlu0 %1282, %v1029
        %v1284 = vpop.permute.xlu0 %1283
        %v1286 = vsub.f32 %v712, %v1129
        %v1287 = vsub.f32 %v714, %v1129
        %v1288 = vsub.f32 %v716, %v1134
        %v1289 = vsub.f32 %v718, %v1134
        %v1290 = vsub.f32 %v722, %v1139
        %v1291 = vsub.f32 %v724, %v1139
        %v1292 = vsub.f32 %v726, %v1144
        %v1293 = vsub.f32 %v728, %v1144
        %v1294 = vsub.f32 %v732, %v1149
        %v1295 = vsub.f32 %v734, %v1149
        %v1296 = vsub.f32 %v736, %v1154
        %v1297 = vsub.f32 %v738, %v1154
        %v1298 = vsub.f32 %v742, %v1159
        %v1299 = vsub.f32 %v744, %v1159
        %v1300 = vsub.f32 %v746, %v1164
        %v1301 = vsub.f32 %v748, %v1164
        %v1302 = vsub.f32 %v752, %v1169
        %v1303 = vsub.f32 %v754, %v1169
        %v1304 = vsub.f32 %v756, %v1174
        %v1305 = vsub.f32 %v758, %v1174
        %v1306 = vsub.f32 %v762, %v1179
        %v1307 = vsub.f32 %v764, %v1179
        %v1308 = vsub.f32 %v766, %v1184
        %v1309 = vsub.f32 %v768, %v1184
        %v1310 = vsub.f32 %v772, %v1189
        %v1311 = vsub.f32 %v774, %v1189
        %v1312 = vsub.f32 %v776, %v1194
        %v1313 = vsub.f32 %v778, %v1194
        %v1314 = vsub.f32 %v782, %v1199
        %v1315 = vsub.f32 %v784, %v1199
        %v1316 = vsub.f32 %v786, %v1204
        %v1317 = vsub.f32 %v788, %v1204
        %v1318 = vsub.f32 %v792, %v1209
        %v1319 = vsub.f32 %v794, %v1209
        %v1320 = vsub.f32 %v796, %v1214
        %v1321 = vsub.f32 %v798, %v1214
        %v1322 = vsub.f32 %v802, %v1219
        %v1323 = vsub.f32 %v804, %v1219
        %v1324 = vsub.f32 %v806, %v1224
        %v1325 = vsub.f32 %v808, %v1224
        %v1326 = vsub.f32 %v812, %v1229
        %v1327 = vsub.f32 %v814, %v1229
        %v1328 = vsub.f32 %v816, %v1234
        %v1329 = vsub.f32 %v818, %v1234
        %v1330 = vsub.f32 %v822, %v1239
        %v1331 = vsub.f32 %v824, %v1239
        %v1332 = vsub.f32 %v826, %v1244
        %v1333 = vsub.f32 %v828, %v1244
        %v1334 = vsub.f32 %v832, %v1249
        %v1335 = vsub.f32 %v834, %v1249
        %v1336 = vsub.f32 %v836, %v1254
        %v1337 = vsub.f32 %v838, %v1254
        %v1338 = vsub.f32 %v842, %v1259
        %v1339 = vsub.f32 %v844, %v1259
        %v1340 = vsub.f32 %v846, %v1264
        %v1341 = vsub.f32 %v848, %v1264
        %v1342 = vsub.f32 %v852, %v1269
        %v1343 = vsub.f32 %v854, %v1269
        %v1344 = vsub.f32 %v856, %v1274
        %v1345 = vsub.f32 %v858, %v1274
        %v1346 = vsub.f32 %v862, %v1279
        %v1347 = vsub.f32 %v864, %v1279
        %v1348 = vsub.f32 %v866, %v1284
        %v1349 = vsub.f32 %v868, %v1284
        %v1350 = vmul.f32 %v1286, 1.442695
        %v1351 = vpow.pop %v1350
        %v1352 = vmul.f32 %v1287, 1.442695
        %v1353 = vpow.pop %v1352
        %v1354 = vmul.f32 %v1288, 1.442695
        %v1355 = vpow.pop %v1354
        %v1356 = vmul.f32 %v1289, 1.442695
        %v1357 = vpow.pop %v1356
        %v1358 = vmul.f32 %v1290, 1.442695
        %v1359 = vpow.pop %v1358
        %v1360 = vmul.f32 %v1291, 1.442695
        %v1361 = vpow.pop %v1360
        %v1362 = vmul.f32 %v1292, 1.442695
        %v1363 = vpow.pop %v1362
        %v1364 = vmul.f32 %v1293, 1.442695
        %v1365 = vpow.pop %v1364
        %v1366 = vmul.f32 %v1294, 1.442695
        %v1367 = vpow.pop %v1366
        %v1368 = vmul.f32 %v1295, 1.442695
        %v1369 = vpow.pop %v1368
        %v1370 = vmul.f32 %v1296, 1.442695
        %v1371 = vpow.pop %v1370
        %v1372 = vmul.f32 %v1297, 1.442695
        %v1373 = vpow.pop %v1372
        %v1374 = vmul.f32 %v1298, 1.442695
        %v1375 = vpow.pop %v1374
        %v1376 = vmul.f32 %v1299, 1.442695
        %v1377 = vpow.pop %v1376
        %v1378 = vmul.f32 %v1300, 1.442695
        %v1379 = vpow.pop %v1378
        %v1380 = vmul.f32 %v1301, 1.442695
        %v1381 = vpow.pop %v1380
        %v1382 = vmul.f32 %v1302, 1.442695
        %v1383 = vpow.pop %v1382
        %v1384 = vmul.f32 %v1303, 1.442695
        %v1385 = vpow.pop %v1384
        %v1386 = vmul.f32 %v1304, 1.442695
        %v1387 = vpow.pop %v1386
        %v1388 = vmul.f32 %v1305, 1.442695
        %v1389 = vpow.pop %v1388
        %v1390 = vmul.f32 %v1306, 1.442695
        %v1391 = vpow.pop %v1390
        %v1392 = vmul.f32 %v1307, 1.442695
        %v1393 = vpow.pop %v1392
        %v1394 = vmul.f32 %v1308, 1.442695
        %v1395 = vpow.pop %v1394
        %v1396 = vmul.f32 %v1309, 1.442695
        %v1397 = vpow.pop %v1396
        %v1398 = vmul.f32 %v1310, 1.442695
        %v1399 = vpow.pop %v1398
        %v1400 = vmul.f32 %v1311, 1.442695
        %v1401 = vpow.pop %v1400
        %v1402 = vmul.f32 %v1312, 1.442695
        %v1403 = vpow.pop %v1402
        %v1404 = vmul.f32 %v1313, 1.442695
        %v1405 = vpow.pop %v1404
        %v1406 = vmul.f32 %v1314, 1.442695
        %v1407 = vpow.pop %v1406
        %v1408 = vmul.f32 %v1315, 1.442695
        %v1409 = vpow.pop %v1408
        %v1410 = vmul.f32 %v1316, 1.442695
        %v1411 = vpow.pop %v1410
        %v1412 = vmul.f32 %v1317, 1.442695
        %v1413 = vpow.pop %v1412
        %v1414 = vmul.f32 %v1318, 1.442695
        %v1415 = vpow.pop %v1414
        %v1416 = vmul.f32 %v1319, 1.442695
        %v1417 = vpow.pop %v1416
        %v1418 = vmul.f32 %v1320, 1.442695
        %v1419 = vpow.pop %v1418
        %v1420 = vmul.f32 %v1321, 1.442695
        %v1421 = vpow.pop %v1420
        %v1422 = vmul.f32 %v1322, 1.442695
        %v1423 = vpow.pop %v1422
        %v1424 = vmul.f32 %v1323, 1.442695
        %v1425 = vpow.pop %v1424
        %v1426 = vmul.f32 %v1324, 1.442695
        %v1427 = vpow.pop %v1426
        %v1428 = vmul.f32 %v1325, 1.442695
        %v1429 = vpow.pop %v1428
        %v1430 = vmul.f32 %v1326, 1.442695
        %v1431 = vpow.pop %v1430
        %v1432 = vmul.f32 %v1327, 1.442695
        %v1433 = vpow.pop %v1432
        %v1434 = vmul.f32 %v1328, 1.442695
        %v1435 = vpow.pop %v1434
        %v1436 = vmul.f32 %v1329, 1.442695
        %v1437 = vpow.pop %v1436
        %v1438 = vmul.f32 %v1330, 1.442695
        %v1439 = vpow.pop %v1438
        %v1440 = vmul.f32 %v1331, 1.442695
        %v1441 = vpow.pop %v1440
        %v1442 = vmul.f32 %v1332, 1.442695
        %v1443 = vpow.pop %v1442
        %v1444 = vmul.f32 %v1333, 1.442695
        %v1445 = vpow.pop %v1444
        %v1446 = vmul.f32 %v1334, 1.442695
        %v1447 = vpow.pop %v1446
        %v1448 = vmul.f32 %v1335, 1.442695
        %v1449 = vpow.pop %v1448
        %v1450 = vmul.f32 %v1336, 1.442695
        %v1451 = vpow.pop %v1450
        %v1452 = vmul.f32 %v1337, 1.442695
        %v1453 = vpow.pop %v1452
        %v1454 = vmul.f32 %v1338, 1.442695
        %v1455 = vpow.pop %v1454
        %v1456 = vmul.f32 %v1339, 1.442695
        %v1457 = vpow.pop %v1456
        %v1458 = vmul.f32 %v1340, 1.442695
        %v1459 = vpow.pop %v1458
        %v1460 = vmul.f32 %v1341, 1.442695
        %v1461 = vpow.pop %v1460
        %v1462 = vmul.f32 %v1342, 1.442695
        %v1463 = vpow.pop %v1462
        %v1464 = vmul.f32 %v1343, 1.442695
        %v1465 = vpow.pop %v1464
        %v1466 = vmul.f32 %v1344, 1.442695
        %v1467 = vpow.pop %v1466
        %v1468 = vmul.f32 %v1345, 1.442695
        %v1469 = vpow.pop %v1468
        %v1470 = vmul.f32 %v1346, 1.442695
        %v1471 = vpow.pop %v1470
        %v1472 = vmul.f32 %v1347, 1.442695
        %v1473 = vpow.pop %v1472
        %v1474 = vmul.f32 %v1348, 1.442695
        %v1475 = vpow.pop %v1474
        %v1476 = vmul.f32 %v1349, 1.442695
        %v1477 = vpow.pop %v1476
        %v1478 = vld [vmem:[#allocation4] sm:$0xff]
        %v1479 = vld [vmem:[#allocation4 + $0x8] sm:$0xff]
        %v1480 = vld [vmem:[#allocation4 + $0x10] sm:$0xff]
        %v1481 = vld [vmem:[#allocation4 + $0x18] sm:$0xff]
        %v1482 = vld [vmem:[#allocation4 + $0x20] sm:$0xff]
        %v1483 = vld [vmem:[#allocation4 + $0x28] sm:$0xff]
        %v1484 = vld [vmem:[#allocation4 + $0x30] sm:$0xff]
        %v1485 = vld [vmem:[#allocation4 + $0x38] sm:$0xff]
        %v1486 = vld [vmem:[#allocation4 + $0x40] sm:$0xff]
        %v1487 = vld [vmem:[#allocation4 + $0x48] sm:$0xff]
        %v1488 = vld [vmem:[#allocation4 + $0x50] sm:$0xff]
        %v1489 = vld [vmem:[#allocation4 + $0x58] sm:$0xff]
        %v1490 = vld [vmem:[#allocation4 + $0x60] sm:$0xff]
        %v1491 = vld [vmem:[#allocation4 + $0x68] sm:$0xff]
        %v1492 = vld [vmem:[#allocation4 + $0x70] sm:$0xff]
        %v1493 = vld [vmem:[#allocation4 + $0x78] sm:$0xff]
        %v1494 = vld [vmem:[#allocation4 + $0x80] sm:$0xff]
        %v1495 = vld [vmem:[#allocation4 + $0x88] sm:$0xff]
        %v1496 = vld [vmem:[#allocation4 + $0x90] sm:$0xff]
        %v1497 = vld [vmem:[#allocation4 + $0x98] sm:$0xff]
        %v1498 = vld [vmem:[#allocation4 + $0xa0] sm:$0xff]
        %v1499 = vld [vmem:[#allocation4 + $0xa8] sm:$0xff]
        %v1500 = vld [vmem:[#allocation4 + $0xb0] sm:$0xff]
        %v1501 = vld [vmem:[#allocation4 + $0xb8] sm:$0xff]
        %v1502 = vld [vmem:[#allocation4 + $0xc0] sm:$0xff]
        %v1503 = vld [vmem:[#allocation4 + $0xc8] sm:$0xff]
        %v1504 = vld [vmem:[#allocation4 + $0xd0] sm:$0xff]
        %v1505 = vld [vmem:[#allocation4 + $0xd8] sm:$0xff]
        %v1506 = vld [vmem:[#allocation4 + $0xe0] sm:$0xff]
        %v1507 = vld [vmem:[#allocation4 + $0xe8] sm:$0xff]
        %v1508 = vld [vmem:[#allocation4 + $0xf0] sm:$0xff]
        %v1509 = vld [vmem:[#allocation4 + $0xf8] sm:$0xff]
        %v1510 = vmul.f32 %v1063, %v1478
        %v1511 = vmul.f32 %v1065, %v1479
        %v1512 = vmul.f32 %v1067, %v1480
        %v1513 = vmul.f32 %v1069, %v1481
        %v1514 = vmul.f32 %v1071, %v1482
        %v1515 = vmul.f32 %v1073, %v1483
        %v1516 = vmul.f32 %v1075, %v1484
        %v1517 = vmul.f32 %v1077, %v1485
        %v1518 = vmul.f32 %v1079, %v1486
        %v1519 = vmul.f32 %v1081, %v1487
        %v1520 = vmul.f32 %v1083, %v1488
        %v1521 = vmul.f32 %v1085, %v1489
        %v1522 = vmul.f32 %v1087, %v1490
        %v1523 = vmul.f32 %v1089, %v1491
        %v1524 = vmul.f32 %v1091, %v1492
        %v1525 = vmul.f32 %v1093, %v1493
        %v1526 = vmul.f32 %v1095, %v1494
        %v1527 = vmul.f32 %v1097, %v1495
        %v1528 = vmul.f32 %v1099, %v1496
        %v1529 = vmul.f32 %v1101, %v1497
        %v1530 = vmul.f32 %v1103, %v1498
        %v1531 = vmul.f32 %v1105, %v1499
        %v1532 = vmul.f32 %v1107, %v1500
        %v1533 = vmul.f32 %v1109, %v1501
        %v1534 = vmul.f32 %v1111, %v1502
        %v1535 = vmul.f32 %v1113, %v1503
        %v1536 = vmul.f32 %v1115, %v1504
        %v1537 = vmul.f32 %v1117, %v1505
        %v1538 = vmul.f32 %v1119, %v1506
        %v1539 = vmul.f32 %v1121, %v1507
        %v1540 = vmul.f32 %v1123, %v1508
        %v1541 = vmul.f32 %v1125, %v1509
        %v1542 = vadd.f32 %v1351, %v1353
        %1543 = vadd.xlane.f32.xlu0 %v1542
        %v1544 = vpop.xlane.xlu0 %1543
        %v1545 = vadd.f32 %v1355, %v1357
        %1546 = vadd.xlane.f32.xlu0 %v1545
        %v1547 = vpop.xlane.xlu0 %1546
        %v1548 = vadd.f32 %v1359, %v1361
        %1549 = vadd.xlane.f32.xlu0 %v1548
        %v1550 = vpop.xlane.xlu0 %1549
        %v1551 = vadd.f32 %v1363, %v1365
        %1552 = vadd.xlane.f32.xlu0 %v1551
        %v1553 = vpop.xlane.xlu0 %1552
        %v1554 = vadd.f32 %v1367, %v1369
        %1555 = vadd.xlane.f32.xlu0 %v1554
        %v1556 = vpop.xlane.xlu0 %1555
        %v1557 = vadd.f32 %v1371, %v1373
        %1558 = vadd.xlane.f32.xlu0 %v1557
        %v1559 = vpop.xlane.xlu0 %1558
        %v1560 = vadd.f32 %v1375, %v1377
        %1561 = vadd.xlane.f32.xlu0 %v1560
        %v1562 = vpop.xlane.xlu0 %1561
        %v1563 = vadd.f32 %v1379, %v1381
        %1564 = vadd.xlane.f32.xlu0 %v1563
        %v1565 = vpop.xlane.xlu0 %1564
        %v1566 = vadd.f32 %v1383, %v1385
        %1567 = vadd.xlane.f32.xlu0 %v1566
        %v1568 = vpop.xlane.xlu0 %1567
        %v1569 = vadd.f32 %v1387, %v1389
        %1570 = vadd.xlane.f32.xlu0 %v1569
        %v1571 = vpop.xlane.xlu0 %1570
        %v1572 = vadd.f32 %v1391, %v1393
        %1573 = vadd.xlane.f32.xlu0 %v1572
        %v1574 = vpop.xlane.xlu0 %1573
        %v1575 = vadd.f32 %v1395, %v1397
        %1576 = vadd.xlane.f32.xlu0 %v1575
        %v1577 = vpop.xlane.xlu0 %1576
        %v1578 = vadd.f32 %v1399, %v1401
        %1579 = vadd.xlane.f32.xlu0 %v1578
        %v1580 = vpop.xlane.xlu0 %1579
        %v1581 = vadd.f32 %v1403, %v1405
        %1582 = vadd.xlane.f32.xlu0 %v1581
        %v1583 = vpop.xlane.xlu0 %1582
        %v1584 = vadd.f32 %v1407, %v1409
        %1585 = vadd.xlane.f32.xlu0 %v1584
        %v1586 = vpop.xlane.xlu0 %1585
        %v1587 = vadd.f32 %v1411, %v1413
        %1588 = vadd.xlane.f32.xlu0 %v1587
        %v1589 = vpop.xlane.xlu0 %1588
        %v1590 = vadd.f32 %v1415, %v1417
        %1591 = vadd.xlane.f32.xlu0 %v1590
        %v1592 = vpop.xlane.xlu0 %1591
        %v1593 = vadd.f32 %v1419, %v1421
        %1594 = vadd.xlane.f32.xlu0 %v1593
        %v1595 = vpop.xlane.xlu0 %1594
        %v1596 = vadd.f32 %v1423, %v1425
        %1597 = vadd.xlane.f32.xlu0 %v1596
        %v1598 = vpop.xlane.xlu0 %1597
        %v1599 = vadd.f32 %v1427, %v1429
        %1600 = vadd.xlane.f32.xlu0 %v1599
        %v1601 = vpop.xlane.xlu0 %1600
        %v1602 = vadd.f32 %v1431, %v1433
        %1603 = vadd.xlane.f32.xlu0 %v1602
        %v1604 = vpop.xlane.xlu0 %1603
        %v1605 = vadd.f32 %v1435, %v1437
        %1606 = vadd.xlane.f32.xlu0 %v1605
        %v1607 = vpop.xlane.xlu0 %1606
        %v1608 = vadd.f32 %v1439, %v1441
        %1609 = vadd.xlane.f32.xlu0 %v1608
        %v1610 = vpop.xlane.xlu0 %1609
        %v1611 = vadd.f32 %v1443, %v1445
        %1612 = vadd.xlane.f32.xlu0 %v1611
        %v1613 = vpop.xlane.xlu0 %1612
        %v1614 = vadd.f32 %v1447, %v1449
        %1615 = vadd.xlane.f32.xlu0 %v1614
        %v1616 = vpop.xlane.xlu0 %1615
        %v1617 = vadd.f32 %v1451, %v1453
        %1618 = vadd.xlane.f32.xlu0 %v1617
        %v1619 = vpop.xlane.xlu0 %1618
        %v1620 = vadd.f32 %v1455, %v1457
        %1621 = vadd.xlane.f32.xlu0 %v1620
        %v1622 = vpop.xlane.xlu0 %1621
        %v1623 = vadd.f32 %v1459, %v1461
        %1624 = vadd.xlane.f32.xlu0 %v1623
        %v1625 = vpop.xlane.xlu0 %1624
        %v1626 = vadd.f32 %v1463, %v1465
        %1627 = vadd.xlane.f32.xlu0 %v1626
        %v1628 = vpop.xlane.xlu0 %1627
        %v1629 = vadd.f32 %v1467, %v1469
        %1630 = vadd.xlane.f32.xlu0 %v1629
        %v1631 = vpop.xlane.xlu0 %1630
        %v1632 = vadd.f32 %v1471, %v1473
        %1633 = vadd.xlane.f32.xlu0 %v1632
        %v1634 = vpop.xlane.xlu0 %1633
        %v1635 = vadd.f32 %v1475, %v1477
        %1636 = vadd.xlane.f32.xlu0 %v1635
        %v1637 = vpop.xlane.xlu0 %1636
        %v1638 = vadd.f32 %v1510, %v1544
        %v1639 = vadd.f32 %v1511, %v1547
        %v1640 = vadd.f32 %v1512, %v1550
        %v1641 = vadd.f32 %v1513, %v1553
        %v1642 = vadd.f32 %v1514, %v1556
        %v1643 = vadd.f32 %v1515, %v1559
        %v1644 = vadd.f32 %v1516, %v1562
        %v1645 = vadd.f32 %v1517, %v1565
        %v1646 = vadd.f32 %v1518, %v1568
        %v1647 = vadd.f32 %v1519, %v1571
        %v1648 = vadd.f32 %v1520, %v1574
        %v1649 = vadd.f32 %v1521, %v1577
        %v1650 = vadd.f32 %v1522, %v1580
        %v1651 = vadd.f32 %v1523, %v1583
        %v1652 = vadd.f32 %v1524, %v1586
        %v1653 = vadd.f32 %v1525, %v1589
        %v1654 = vadd.f32 %v1526, %v1592
        %v1655 = vadd.f32 %v1527, %v1595
        %v1656 = vadd.f32 %v1528, %v1598
        %v1657 = vadd.f32 %v1529, %v1601
        %v1658 = vadd.f32 %v1530, %v1604
        %v1659 = vadd.f32 %v1531, %v1607
        %v1660 = vadd.f32 %v1532, %v1610
        %v1661 = vadd.f32 %v1533, %v1613
        %v1662 = vadd.f32 %v1534, %v1616
        %v1663 = vadd.f32 %v1535, %v1619
        %v1664 = vadd.f32 %v1536, %v1622
        %v1665 = vadd.f32 %v1537, %v1625
        %v1666 = vadd.f32 %v1538, %v1628
        %v1667 = vadd.f32 %v1539, %v1631
        %v1668 = vadd.f32 %v1540, %v1634
        %v1669 = vadd.f32 %v1541, %v1637
        %vm1670 = vcmask 7168
        %1671 = vst.msk [vmem:[#allocation4] sm:$0xff] %vm1670, %v1638
        %1672 = vst.msk [vmem:[#allocation4 + $0x8] sm:$0xff] %vm1670, %v1639
        %1673 = vst.msk [vmem:[#allocation4 + $0x10] sm:$0xff] %vm1670, %v1640
        %1674 = vst.msk [vmem:[#allocation4 + $0x18] sm:$0xff] %vm1670, %v1641
        %1675 = vst.msk [vmem:[#allocation4 + $0x20] sm:$0xff] %vm1670, %v1642
        %1676 = vst.msk [vmem:[#allocation4 + $0x28] sm:$0xff] %vm1670, %v1643
        %1677 = vst.msk [vmem:[#allocation4 + $0x30] sm:$0xff] %vm1670, %v1644
        %1678 = vst.msk [vmem:[#allocation4 + $0x38] sm:$0xff] %vm1670, %v1645
        %1679 = vst.msk [vmem:[#allocation4 + $0x40] sm:$0xff] %vm1670, %v1646
        %1680 = vst.msk [vmem:[#allocation4 + $0x48] sm:$0xff] %vm1670, %v1647
        %1681 = vst.msk [vmem:[#allocation4 + $0x50] sm:$0xff] %vm1670, %v1648
        %1682 = vst.msk [vmem:[#allocation4 + $0x58] sm:$0xff] %vm1670, %v1649
        %1683 = vst.msk [vmem:[#allocation4 + $0x60] sm:$0xff] %vm1670, %v1650
        %1684 = vst.msk [vmem:[#allocation4 + $0x68] sm:$0xff] %vm1670, %v1651
        %1685 = vst.msk [vmem:[#allocation4 + $0x70] sm:$0xff] %vm1670, %v1652
        %1686 = vst.msk [vmem:[#allocation4 + $0x78] sm:$0xff] %vm1670, %v1653
        %1687 = vst.msk [vmem:[#allocation4 + $0x80] sm:$0xff] %vm1670, %v1654
        %1688 = vst.msk [vmem:[#allocation4 + $0x88] sm:$0xff] %vm1670, %v1655
        %1689 = vst.msk [vmem:[#allocation4 + $0x90] sm:$0xff] %vm1670, %v1656
        %1690 = vst.msk [vmem:[#allocation4 + $0x98] sm:$0xff] %vm1670, %v1657
        %1691 = vst.msk [vmem:[#allocation4 + $0xa0] sm:$0xff] %vm1670, %v1658
        %1692 = vst.msk [vmem:[#allocation4 + $0xa8] sm:$0xff] %vm1670, %v1659
        %1693 = vst.msk [vmem:[#allocation4 + $0xb0] sm:$0xff] %vm1670, %v1660
        %1694 = vst.msk [vmem:[#allocation4 + $0xb8] sm:$0xff] %vm1670, %v1661
        %1695 = vst.msk [vmem:[#allocation4 + $0xc0] sm:$0xff] %vm1670, %v1662
        %1696 = vst.msk [vmem:[#allocation4 + $0xc8] sm:$0xff] %vm1670, %v1663
        %1697 = vst.msk [vmem:[#allocation4 + $0xd0] sm:$0xff] %vm1670, %v1664
        %1698 = vst.msk [vmem:[#allocation4 + $0xd8] sm:$0xff] %vm1670, %v1665
        %1699 = vst.msk [vmem:[#allocation4 + $0xe0] sm:$0xff] %vm1670, %v1666
        %1700 = vst.msk [vmem:[#allocation4 + $0xe8] sm:$0xff] %vm1670, %v1667
        %1701 = vst.msk [vmem:[#allocation4 + $0xf0] sm:$0xff] %vm1670, %v1668
        %1702 = vst.msk [vmem:[#allocation4 + $0xf8] sm:$0xff] %vm1670, %v1669
        %v1703 = vld [vmem:[#allocation5] sm:$0xff]
        %v1704 = vld [vmem:[#allocation5 + $0x8] sm:$0xff]
        %v1705 = vld [vmem:[#allocation5 + $0x10] sm:$0xff]
        %v1706 = vld [vmem:[#allocation5 + $0x18] sm:$0xff]
        %v1707 = vld [vmem:[#allocation5 + $0x20] sm:$0xff]
        %v1708 = vld [vmem:[#allocation5 + $0x28] sm:$0xff]
        %v1709 = vld [vmem:[#allocation5 + $0x30] sm:$0xff]
        %v1710 = vld [vmem:[#allocation5 + $0x38] sm:$0xff]
        %v1711 = vld [vmem:[#allocation5 + $0x40] sm:$0xff]
        %v1712 = vld [vmem:[#allocation5 + $0x48] sm:$0xff]
        %v1713 = vld [vmem:[#allocation5 + $0x50] sm:$0xff]
        %v1714 = vld [vmem:[#allocation5 + $0x58] sm:$0xff]
        %v1715 = vld [vmem:[#allocation5 + $0x60] sm:$0xff]
        %v1716 = vld [vmem:[#allocation5 + $0x68] sm:$0xff]
        %v1717 = vld [vmem:[#allocation5 + $0x70] sm:$0xff]
        %v1718 = vld [vmem:[#allocation5 + $0x78] sm:$0xff]
        %v1719 = vld [vmem:[#allocation5 + $0x80] sm:$0xff]
        %v1720 = vld [vmem:[#allocation5 + $0x88] sm:$0xff]
        %v1721 = vld [vmem:[#allocation5 + $0x90] sm:$0xff]
        %v1722 = vld [vmem:[#allocation5 + $0x98] sm:$0xff]
        %v1723 = vld [vmem:[#allocation5 + $0xa0] sm:$0xff]
        %v1724 = vld [vmem:[#allocation5 + $0xa8] sm:$0xff]
        %v1725 = vld [vmem:[#allocation5 + $0xb0] sm:$0xff]
        %v1726 = vld [vmem:[#allocation5 + $0xb8] sm:$0xff]
        %v1727 = vld [vmem:[#allocation5 + $0xc0] sm:$0xff]
        %v1728 = vld [vmem:[#allocation5 + $0xc8] sm:$0xff]
        %v1729 = vld [vmem:[#allocation5 + $0xd0] sm:$0xff]
        %v1730 = vld [vmem:[#allocation5 + $0xd8] sm:$0xff]
        %v1731 = vld [vmem:[#allocation5 + $0xe0] sm:$0xff]
        %v1732 = vld [vmem:[#allocation5 + $0xe8] sm:$0xff]
        %v1733 = vld [vmem:[#allocation5 + $0xf0] sm:$0xff]
        %v1734 = vld [vmem:[#allocation5 + $0xf8] sm:$0xff]
        %1736 = vset.pattern.permute.xlu0 0
        %1737 = vperm.xlu0 %1736, %v1063
        %v1738 = vpop.permute.xlu0 %1737
        %1741 = vset.pattern.permute.xlu0 0
        %1742 = vperm.xlu0 %1741, %v1065
        %v1743 = vpop.permute.xlu0 %1742
        %1746 = vset.pattern.permute.xlu0 0
        %1747 = vperm.xlu0 %1746, %v1067
        %v1748 = vpop.permute.xlu0 %1747
        %1751 = vset.pattern.permute.xlu0 0
        %1752 = vperm.xlu0 %1751, %v1069
        %v1753 = vpop.permute.xlu0 %1752
        %1756 = vset.pattern.permute.xlu0 0
        %1757 = vperm.xlu0 %1756, %v1071
        %v1758 = vpop.permute.xlu0 %1757
        %1761 = vset.pattern.permute.xlu0 0
        %1762 = vperm.xlu0 %1761, %v1073
        %v1763 = vpop.permute.xlu0 %1762
        %1766 = vset.pattern.permute.xlu0 0
        %1767 = vperm.xlu0 %1766, %v1075
        %v1768 = vpop.permute.xlu0 %1767
        %1771 = vset.pattern.permute.xlu0 0
        %1772 = vperm.xlu0 %1771, %v1077
        %v1773 = vpop.permute.xlu0 %1772
        %1776 = vset.pattern.permute.xlu0 0
        %1777 = vperm.xlu0 %1776, %v1079
        %v1778 = vpop.permute.xlu0 %1777
        %1781 = vset.pattern.permute.xlu0 0
        %1782 = vperm.xlu0 %1781, %v1081
        %v1783 = vpop.permute.xlu0 %1782
        %1786 = vset.pattern.permute.xlu0 0
        %1787 = vperm.xlu0 %1786, %v1083
        %v1788 = vpop.permute.xlu0 %1787
        %1791 = vset.pattern.permute.xlu0 0
        %1792 = vperm.xlu0 %1791, %v1085
        %v1793 = vpop.permute.xlu0 %1792
        %1796 = vset.pattern.permute.xlu0 0
        %1797 = vperm.xlu0 %1796, %v1087
        %v1798 = vpop.permute.xlu0 %1797
        %1801 = vset.pattern.permute.xlu0 0
        %1802 = vperm.xlu0 %1801, %v1089
        %v1803 = vpop.permute.xlu0 %1802
        %1806 = vset.pattern.permute.xlu0 0
        %1807 = vperm.xlu0 %1806, %v1091
        %v1808 = vpop.permute.xlu0 %1807
        %1811 = vset.pattern.permute.xlu0 0
        %1812 = vperm.xlu0 %1811, %v1093
        %v1813 = vpop.permute.xlu0 %1812
        %1816 = vset.pattern.permute.xlu0 0
        %1817 = vperm.xlu0 %1816, %v1095
        %v1818 = vpop.permute.xlu0 %1817
        %1821 = vset.pattern.permute.xlu0 0
        %1822 = vperm.xlu0 %1821, %v1097
        %v1823 = vpop.permute.xlu0 %1822
        %1826 = vset.pattern.permute.xlu0 0
        %1827 = vperm.xlu0 %1826, %v1099
        %v1828 = vpop.permute.xlu0 %1827
        %1831 = vset.pattern.permute.xlu0 0
        %1832 = vperm.xlu0 %1831, %v1101
        %v1833 = vpop.permute.xlu0 %1832
        %1836 = vset.pattern.permute.xlu0 0
        %1837 = vperm.xlu0 %1836, %v1103
        %v1838 = vpop.permute.xlu0 %1837
        %1841 = vset.pattern.permute.xlu0 0
        %1842 = vperm.xlu0 %1841, %v1105
        %v1843 = vpop.permute.xlu0 %1842
        %1846 = vset.pattern.permute.xlu0 0
        %1847 = vperm.xlu0 %1846, %v1107
        %v1848 = vpop.permute.xlu0 %1847
        %1851 = vset.pattern.permute.xlu0 0
        %1852 = vperm.xlu0 %1851, %v1109
        %v1853 = vpop.permute.xlu0 %1852
        %1856 = vset.pattern.permute.xlu0 0
        %1857 = vperm.xlu0 %1856, %v1111
        %v1858 = vpop.permute.xlu0 %1857
        %1861 = vset.pattern.permute.xlu0 0
        %1862 = vperm.xlu0 %1861, %v1113
        %v1863 = vpop.permute.xlu0 %1862
        %1866 = vset.pattern.permute.xlu0 0
        %1867 = vperm.xlu0 %1866, %v1115
        %v1868 = vpop.permute.xlu0 %1867
        %1871 = vset.pattern.permute.xlu0 0
        %1872 = vperm.xlu0 %1871, %v1117
        %v1873 = vpop.permute.xlu0 %1872
        %1876 = vset.pattern.permute.xlu0 0
        %1877 = vperm.xlu0 %1876, %v1119
        %v1878 = vpop.permute.xlu0 %1877
        %1881 = vset.pattern.permute.xlu0 0
        %1882 = vperm.xlu0 %1881, %v1121
        %v1883 = vpop.permute.xlu0 %1882
        %1886 = vset.pattern.permute.xlu0 0
        %1887 = vperm.xlu0 %1886, %v1123
        %v1888 = vpop.permute.xlu0 %1887
        %1891 = vset.pattern.permute.xlu0 0
        %1892 = vperm.xlu0 %1891, %v1125
        %v1893 = vpop.permute.xlu0 %1892
        %v1895 = vmul.f32 %v1738, %v1703
        %v1896 = vmul.f32 %v1743, %v1704
        %v1897 = vmul.f32 %v1748, %v1705
        %v1898 = vmul.f32 %v1753, %v1706
        %v1899 = vmul.f32 %v1758, %v1707
        %v1900 = vmul.f32 %v1763, %v1708
        %v1901 = vmul.f32 %v1768, %v1709
        %v1902 = vmul.f32 %v1773, %v1710
        %v1903 = vmul.f32 %v1778, %v1711
        %v1904 = vmul.f32 %v1783, %v1712
        %v1905 = vmul.f32 %v1788, %v1713
        %v1906 = vmul.f32 %v1793, %v1714
        %v1907 = vmul.f32 %v1798, %v1715
        %v1908 = vmul.f32 %v1803, %v1716
        %v1909 = vmul.f32 %v1808, %v1717
        %v1910 = vmul.f32 %v1813, %v1718
        %v1911 = vmul.f32 %v1818, %v1719
        %v1912 = vmul.f32 %v1823, %v1720
        %v1913 = vmul.f32 %v1828, %v1721
        %v1914 = vmul.f32 %v1833, %v1722
        %v1915 = vmul.f32 %v1838, %v1723
        %v1916 = vmul.f32 %v1843, %v1724
        %v1917 = vmul.f32 %v1848, %v1725
        %v1918 = vmul.f32 %v1853, %v1726
        %v1919 = vmul.f32 %v1858, %v1727
        %v1920 = vmul.f32 %v1863, %v1728
        %v1921 = vmul.f32 %v1868, %v1729
        %v1922 = vmul.f32 %v1873, %v1730
        %v1923 = vmul.f32 %v1878, %v1731
        %v1924 = vmul.f32 %v1883, %v1732
        %v1925 = vmul.f32 %v1888, %v1733
        %v1926 = vmul.f32 %v1893, %v1734
        %v1927 = vpack.c.bf16 %v1355, %v1351
        %v1928 = vpack.c.bf16 %v1357, %v1353
        %v1929 = vpack.c.bf16 %v1363, %v1359
        %v1930 = vpack.c.bf16 %v1365, %v1361
        %v1931 = vpack.c.bf16 %v1371, %v1367
        %v1932 = vpack.c.bf16 %v1373, %v1369
        %v1933 = vpack.c.bf16 %v1379, %v1375
        %v1934 = vpack.c.bf16 %v1381, %v1377
        %v1935 = vpack.c.bf16 %v1387, %v1383
        %v1936 = vpack.c.bf16 %v1389, %v1385
        %v1937 = vpack.c.bf16 %v1395, %v1391
        %v1938 = vpack.c.bf16 %v1397, %v1393
        %v1939 = vpack.c.bf16 %v1403, %v1399
        %v1940 = vpack.c.bf16 %v1405, %v1401
        %v1941 = vpack.c.bf16 %v1411, %v1407
        %v1942 = vpack.c.bf16 %v1413, %v1409
        %v1943 = vpack.c.bf16 %v1419, %v1415
        %v1944 = vpack.c.bf16 %v1421, %v1417
        %v1945 = vpack.c.bf16 %v1427, %v1423
        %v1946 = vpack.c.bf16 %v1429, %v1425
        %v1947 = vpack.c.bf16 %v1435, %v1431
        %v1948 = vpack.c.bf16 %v1437, %v1433
        %v1949 = vpack.c.bf16 %v1443, %v1439
        %v1950 = vpack.c.bf16 %v1445, %v1441
        %v1951 = vpack.c.bf16 %v1451, %v1447
        %v1952 = vpack.c.bf16 %v1453, %v1449
        %v1953 = vpack.c.bf16 %v1459, %v1455
        %v1954 = vpack.c.bf16 %v1461, %v1457
        %v1955 = vpack.c.bf16 %v1467, %v1463
        %v1956 = vpack.c.bf16 %v1469, %v1465
        %v1957 = vpack.c.bf16 %v1475, %v1471
        %v1958 = vpack.c.bf16 %v1477, %v1473
        %v1959 = vld [vmem:[%s266] sm:$0xf]
        %v1960 = vld [vmem:[%s266 + $0x4] sm:$0xf]
        %v1961 = vld [vmem:[%s266 + $0x8] sm:$0xf]
        %v1962 = vld [vmem:[%s266 + $0xc] sm:$0xf]
        %v1963 = vld [vmem:[%s266 + $0x10] sm:$0xf]
        %v1964 = vld [vmem:[%s266 + $0x14] sm:$0xf]
        %v1965 = vld [vmem:[%s266 + $0x18] sm:$0xf]
        %v1966 = vld [vmem:[%s266 + $0x1c] sm:$0xf]
        %v1967 = vld [vmem:[%s266 + $0x20] sm:$0xf]
        %v1968 = vld [vmem:[%s266 + $0x24] sm:$0xf]
        %v1969 = vld [vmem:[%s266 + $0x28] sm:$0xf]
        %v1970 = vld [vmem:[%s266 + $0x2c] sm:$0xf]
        %v1971 = vld [vmem:[%s266 + $0x30] sm:$0xf]
        %v1972 = vld [vmem:[%s266 + $0x34] sm:$0xf]
        %v1973 = vld [vmem:[%s266 + $0x38] sm:$0xf]
        %v1974 = vld [vmem:[%s266 + $0x3c] sm:$0xf]
        %v1975 = vld [vmem:[%s266 + $0x40] sm:$0xf]
        %v1976 = vld [vmem:[%s266 + $0x44] sm:$0xf]
        %v1977 = vld [vmem:[%s266 + $0x48] sm:$0xf]
        %v1978 = vld [vmem:[%s266 + $0x4c] sm:$0xf]
        %v1979 = vld [vmem:[%s266 + $0x50] sm:$0xf]
        %v1980 = vld [vmem:[%s266 + $0x54] sm:$0xf]
        %v1981 = vld [vmem:[%s266 + $0x58] sm:$0xf]
        %v1982 = vld [vmem:[%s266 + $0x5c] sm:$0xf]
        %v1983 = vld [vmem:[%s266 + $0x60] sm:$0xf]
        %v1984 = vld [vmem:[%s266 + $0x64] sm:$0xf]
        %v1985 = vld [vmem:[%s266 + $0x68] sm:$0xf]
        %v1986 = vld [vmem:[%s266 + $0x6c] sm:$0xf]
        %v1987 = vld [vmem:[%s266 + $0x70] sm:$0xf]
        %v1988 = vld [vmem:[%s266 + $0x74] sm:$0xf]
        %v1989 = vld [vmem:[%s266 + $0x78] sm:$0xf]
        %v1990 = vld [vmem:[%s266 + $0x7c] sm:$0xf]
        %v2023 = vunpack.c.l.b16 %v1959
        %v2024 = vunpack.c.l.b16 %v1960
        %v2025 = vunpack.c.l.b16 %v1961
        %v2026 = vunpack.c.l.b16 %v1962
        %v2027 = vunpack.c.l.b16 %v1963
        %v2028 = vunpack.c.l.b16 %v1964
        %v2029 = vunpack.c.l.b16 %v1965
        %v2030 = vunpack.c.l.b16 %v1966
        %v2031 = vunpack.c.l.b16 %v1967
        %v2032 = vunpack.c.l.b16 %v1968
        %v2033 = vunpack.c.l.b16 %v1969
        %v2034 = vunpack.c.l.b16 %v1970
        %v2035 = vunpack.c.l.b16 %v1971
        %v2036 = vunpack.c.l.b16 %v1972
        %v2037 = vunpack.c.l.b16 %v1973
        %v2038 = vunpack.c.l.b16 %v1974
        %v2039 = vunpack.c.l.b16 %v1975
        %v2040 = vunpack.c.l.b16 %v1976
        %v2041 = vunpack.c.l.b16 %v1977
        %v2042 = vunpack.c.l.b16 %v1978
        %v2043 = vunpack.c.l.b16 %v1979
        %v2044 = vunpack.c.l.b16 %v1980
        %v2045 = vunpack.c.l.b16 %v1981
        %v2046 = vunpack.c.l.b16 %v1982
        %v2047 = vunpack.c.l.b16 %v1983
        %v2048 = vunpack.c.l.b16 %v1984
        %v2049 = vunpack.c.l.b16 %v1985
        %v2050 = vunpack.c.l.b16 %v1986
        %v2051 = vunpack.c.l.b16 %v1987
        %v2052 = vunpack.c.l.b16 %v1988
        %v2053 = vunpack.c.l.b16 %v1989
        %v2054 = vunpack.c.l.b16 %v1990
        %v2055 = vpack.c.b16 %v2024, %v2023
        %v2056 = vpack.c.b16 %v2026, %v2025
        %v2057 = vpack.c.b16 %v2028, %v2027
        %v2058 = vpack.c.b16 %v2030, %v2029
        %v2059 = vpack.c.b16 %v2032, %v2031
        %v2060 = vpack.c.b16 %v2034, %v2033
        %v2061 = vpack.c.b16 %v2036, %v2035
        %v2062 = vpack.c.b16 %v2038, %v2037
        %v2063 = vpack.c.b16 %v2040, %v2039
        %v2064 = vpack.c.b16 %v2042, %v2041
        %v2065 = vpack.c.b16 %v2044, %v2043
        %v2066 = vpack.c.b16 %v2046, %v2045
        %v2067 = vpack.c.b16 %v2048, %v2047
        %v2068 = vpack.c.b16 %v2050, %v2049
        %v2069 = vpack.c.b16 %v2052, %v2051
        %v2070 = vpack.c.b16 %v2054, %v2053
        %2087 = vmatprep.subr.bf16.mxu0 0
        %2088 = vmatpush1.bf16.msra.mxu0 %v2055
        %2089 = vmatprep.subr.bf16.mxu0 0
        %2090 = vmatpush1.bf16.msra.mxu0 %v2056
        %2091 = vmatprep.subr.bf16.mxu0 0
        %2092 = vmatpush1.bf16.msra.mxu0 %v2057
        %2093 = vmatprep.subr.bf16.mxu0 0
        %2094 = vmatpush1.bf16.msra.mxu0 %v2058
        %2095 = vmatprep.subr.bf16.mxu0 0
        %2096 = vmatpush1.bf16.msra.mxu0 %v2059
        %2097 = vmatprep.subr.bf16.mxu0 0
        %2098 = vmatpush1.bf16.msra.mxu0 %v2060
        %2099 = vmatprep.subr.bf16.mxu0 0
        %2100 = vmatpush1.bf16.msra.mxu0 %v2061
        %2101 = vmatprep.subr.bf16.mxu0 0
        %2102 = vmatpush1.bf16.msra.mxu0 %v2062
        %2103 = vmatprep.subr.bf16.mxu0 0
        %2104 = vmatpush1.bf16.msra.mxu0 %v2063
        %2105 = vmatprep.subr.bf16.mxu0 0
        %2106 = vmatpush1.bf16.msra.mxu0 %v2064
        %2107 = vmatprep.subr.bf16.mxu0 0
        %2108 = vmatpush1.bf16.msra.mxu0 %v2065
        %2109 = vmatprep.subr.bf16.mxu0 0
        %2110 = vmatpush1.bf16.msra.mxu0 %v2066
        %2111 = vmatprep.subr.bf16.mxu0 0
        %2112 = vmatpush1.bf16.msra.mxu0 %v2067
        %2113 = vmatprep.subr.bf16.mxu0 0
        %2114 = vmatpush1.bf16.msra.mxu0 %v2068
        %2115 = vmatprep.subr.bf16.mxu0 0
        %2116 = vmatpush1.bf16.msra.mxu0 %v2069
        %2117 = vmatprep.subr.bf16.mxu0 0
        %2118 = vmatpush1.bf16.msra.mxu0 %v2070
        %2119 = vmatprep.mubr.bf16.mxu0 %v1928
        %2120 = vmatmul.mubr.bf16.gmra.mrb[0].mxu0 %v1927
        %v2121 = vpop.f32.mrb[0].mxu0
        %v2122 = vadd.f32 0.0, %v2121
        %v2123 = vpop.f32.mrb[0].mxu0
        %v2124 = vpop.f32.mrb[0].mxu0
        %v2125 = vadd.f32 0.0, %v2124
        %v2126 = vpop.f32.mrb[0].mxu0
        %2127 = vmatprep.mubr.bf16.mxu0 %v1930
        %2128 = vmatmul.mubr.bf16.gmra.mrb[0].mxu0 %v1929
        %v2129 = vpop.f32.mrb[0].mxu0
        %v2130 = vadd.f32 0.0, %v2129
        %v2131 = vpop.f32.mrb[0].mxu0
        %v2132 = vpop.f32.mrb[0].mxu0
        %v2133 = vadd.f32 0.0, %v2132
        %v2134 = vpop.f32.mrb[0].mxu0
        %2135 = vmatprep.mubr.bf16.mxu0 %v1932
        %2136 = vmatmul.mubr.bf16.gmra.mrb[0].mxu0 %v1931
        %v2137 = vpop.f32.mrb[0].mxu0
        %v2138 = vadd.f32 0.0, %v2137
        %v2139 = vpop.f32.mrb[0].mxu0
        %v2140 = vpop.f32.mrb[0].mxu0
        %v2141 = vadd.f32 0.0, %v2140
        %v2142 = vpop.f32.mrb[0].mxu0
        %2143 = vmatprep.mubr.bf16.mxu0 %v1934
        %2144 = vmatmul.mubr.bf16.gmra.mrb[0].mxu0 %v1933
        %v2145 = vpop.f32.mrb[0].mxu0
        %v2146 = vadd.f32 0.0, %v2145
        %v2147 = vpop.f32.mrb[0].mxu0
        %v2148 = vpop.f32.mrb[0].mxu0
        %v2149 = vadd.f32 0.0, %v2148
        %v2150 = vpop.f32.mrb[0].mxu0
        %2151 = vmatprep.mubr.bf16.mxu0 %v1936
        %2152 = vmatmul.mubr.bf16.gmra.mrb[0].mxu0 %v1935
        %v2153 = vpop.f32.mrb[0].mxu0
        %v2154 = vadd.f32 0.0, %v2153
        %v2155 = vpop.f32.mrb[0].mxu0
        %v2156 = vpop.f32.mrb[0].mxu0
        %v2157 = vadd.f32 0.0, %v2156
        %v2158 = vpop.f32.mrb[0].mxu0
        %2159 = vmatprep.mubr.bf16.mxu0 %v1938
        %2160 = vmatmul.mubr.bf16.gmra.mrb[0].mxu0 %v1937
        %v2161 = vpop.f32.mrb[0].mxu0
        %v2162 = vadd.f32 0.0, %v2161
        %v2163 = vpop.f32.mrb[0].mxu0
        %v2164 = vpop.f32.mrb[0].mxu0
        %v2165 = vadd.f32 0.0, %v2164
        %v2166 = vpop.f32.mrb[0].mxu0
        %2167 = vmatprep.mubr.bf16.mxu0 %v1940
        %2168 = vmatmul.mubr.bf16.gmra.mrb[0].mxu0 %v1939
        %v2169 = vpop.f32.mrb[0].mxu0
        %v2170 = vadd.f32 0.0, %v2169
        %v2171 = vpop.f32.mrb[0].mxu0
        %v2172 = vpop.f32.mrb[0].mxu0
        %v2173 = vadd.f32 0.0, %v2172
        %v2174 = vpop.f32.mrb[0].mxu0
        %2175 = vmatprep.mubr.bf16.mxu0 %v1942
        %2176 = vmatmul.mubr.bf16.gmra.mrb[0].mxu0 %v1941
        %v2177 = vpop.f32.mrb[0].mxu0
        %v2178 = vadd.f32 0.0, %v2177
        %v2179 = vpop.f32.mrb[0].mxu0
        %v2180 = vpop.f32.mrb[0].mxu0
        %v2181 = vadd.f32 0.0, %v2180
        %v2182 = vpop.f32.mrb[0].mxu0
        %2183 = vmatprep.mubr.bf16.mxu0 %v1944
        %2184 = vmatmul.mubr.bf16.gmra.mrb[0].mxu0 %v1943
        %v2185 = vpop.f32.mrb[0].mxu0
        %v2186 = vadd.f32 0.0, %v2185
        %v2187 = vpop.f32.mrb[0].mxu0
        %v2188 = vpop.f32.mrb[0].mxu0
        %v2189 = vadd.f32 0.0, %v2188
        %v2190 = vpop.f32.mrb[0].mxu0
        %2191 = vmatprep.mubr.bf16.mxu0 %v1946
        %2192 = vmatmul.mubr.bf16.gmra.mrb[0].mxu0 %v1945
        %v2193 = vpop.f32.mrb[0].mxu0
        %v2194 = vadd.f32 0.0, %v2193
        %v2195 = vpop.f32.mrb[0].mxu0
        %v2196 = vpop.f32.mrb[0].mxu0
        %v2197 = vadd.f32 0.0, %v2196
        %v2198 = vpop.f32.mrb[0].mxu0
        %2199 = vmatprep.mubr.bf16.mxu0 %v1948
        %2200 = vmatmul.mubr.bf16.gmra.mrb[0].mxu0 %v1947
        %v2201 = vpop.f32.mrb[0].mxu0
        %v2202 = vadd.f32 0.0, %v2201
        %v2203 = vpop.f32.mrb[0].mxu0
        %v2204 = vpop.f32.mrb[0].mxu0
        %v2205 = vadd.f32 0.0, %v2204
        %v2206 = vpop.f32.mrb[0].mxu0
        %2207 = vmatprep.mubr.bf16.mxu0 %v1950
        %2208 = vmatmul.mubr.bf16.gmra.mrb[0].mxu0 %v1949
        %v2209 = vpop.f32.mrb[0].mxu0
        %v2210 = vadd.f32 0.0, %v2209
        %v2211 = vpop.f32.mrb[0].mxu0
        %v2212 = vpop.f32.mrb[0].mxu0
        %v2213 = vadd.f32 0.0, %v2212
        %v2214 = vpop.f32.mrb[0].mxu0
        %2215 = vmatprep.mubr.bf16.mxu0 %v1952
        %2216 = vmatmul.mubr.bf16.gmra.mrb[0].mxu0 %v1951
        %v2217 = vpop.f32.mrb[0].mxu0
        %v2218 = vadd.f32 0.0, %v2217
        %v2219 = vpop.f32.mrb[0].mxu0
        %v2220 = vpop.f32.mrb[0].mxu0
        %v2221 = vadd.f32 0.0, %v2220
        %v2222 = vpop.f32.mrb[0].mxu0
        %2223 = vmatprep.mubr.bf16.mxu0 %v1954
        %2224 = vmatmul.mubr.bf16.gmra.mrb[0].mxu0 %v1953
        %v2225 = vpop.f32.mrb[0].mxu0
        %v2226 = vadd.f32 0.0, %v2225
        %v2227 = vpop.f32.mrb[0].mxu0
        %v2228 = vpop.f32.mrb[0].mxu0
        %v2229 = vadd.f32 0.0, %v2228
        %v2230 = vpop.f32.mrb[0].mxu0
        %2231 = vmatprep.mubr.bf16.mxu0 %v1956
        %2232 = vmatmul.mubr.bf16.gmra.mrb[0].mxu0 %v1955
        %v2233 = vpop.f32.mrb[0].mxu0
        %v2234 = vadd.f32 0.0, %v2233
        %v2235 = vpop.f32.mrb[0].mxu0
        %v2236 = vpop.f32.mrb[0].mxu0
        %v2237 = vadd.f32 0.0, %v2236
        %v2238 = vpop.f32.mrb[0].mxu0
        %2239 = vmatprep.mubr.bf16.mxu0 %v1958
        %2240 = vmatmul.mubr.bf16.gmra.mrb[0].mxu0 %v1957
        %v2241 = vpop.f32.mrb[0].mxu0
        %v2242 = vadd.f32 0.0, %v2241
        %v2243 = vpop.f32.mrb[0].mxu0
        %v2244 = vpop.f32.mrb[0].mxu0
        %v2245 = vadd.f32 0.0, %v2244
        %v2246 = vpop.f32.mrb[0].mxu0
        %2247 = vdwg.mxu0
        %v2248 = vadd.f32 %v1895, %v2122
        %v2249 = vadd.f32 %v1896, %v2125
        %v2250 = vadd.f32 %v1897, %v2130
        %v2251 = vadd.f32 %v1898, %v2133
        %v2252 = vadd.f32 %v1899, %v2138
        %v2253 = vadd.f32 %v1900, %v2141
        %v2254 = vadd.f32 %v1901, %v2146
        %v2255 = vadd.f32 %v1902, %v2149
        %v2256 = vadd.f32 %v1903, %v2154
        %v2257 = vadd.f32 %v1904, %v2157
        %v2258 = vadd.f32 %v1905, %v2162
        %v2259 = vadd.f32 %v1906, %v2165
        %v2260 = vadd.f32 %v1907, %v2170
        %v2261 = vadd.f32 %v1908, %v2173
        %v2262 = vadd.f32 %v1909, %v2178
        %v2263 = vadd.f32 %v1910, %v2181
        %v2264 = vadd.f32 %v1911, %v2186
        %v2265 = vadd.f32 %v1912, %v2189
        %v2266 = vadd.f32 %v1913, %v2194
        %v2267 = vadd.f32 %v1914, %v2197
        %v2268 = vadd.f32 %v1915, %v2202
        %v2269 = vadd.f32 %v1916, %v2205
        %v2270 = vadd.f32 %v1917, %v2210
        %v2271 = vadd.f32 %v1918, %v2213
        %v2272 = vadd.f32 %v1919, %v2218
        %v2273 = vadd.f32 %v1920, %v2221
        %v2274 = vadd.f32 %v1921, %v2226
        %v2275 = vadd.f32 %v1922, %v2229
        %v2276 = vadd.f32 %v1923, %v2234
        %v2277 = vadd.f32 %v1924, %v2237
        %v2278 = vadd.f32 %v1925, %v2242
        %v2279 = vadd.f32 %v1926, %v2245
        %2280 = vst [vmem:[#allocation5] sm:$0xff] %v2248
        %2281 = vst [vmem:[#allocation5 + $0x8] sm:$0xff] %v2249
        %2282 = vst [vmem:[#allocation5 + $0x10] sm:$0xff] %v2250
        %2283 = vst [vmem:[#allocation5 + $0x18] sm:$0xff] %v2251
        %2284 = vst [vmem:[#allocation5 + $0x20] sm:$0xff] %v2252
        %2285 = vst [vmem:[#allocation5 + $0x28] sm:$0xff] %v2253
        %2286 = vst [vmem:[#allocation5 + $0x30] sm:$0xff] %v2254
        %2287 = vst [vmem:[#allocation5 + $0x38] sm:$0xff] %v2255
        %2288 = vst [vmem:[#allocation5 + $0x40] sm:$0xff] %v2256
        %2289 = vst [vmem:[#allocation5 + $0x48] sm:$0xff] %v2257
        %2290 = vst [vmem:[#allocation5 + $0x50] sm:$0xff] %v2258
        %2291 = vst [vmem:[#allocation5 + $0x58] sm:$0xff] %v2259
        %2292 = vst [vmem:[#allocation5 + $0x60] sm:$0xff] %v2260
        %2293 = vst [vmem:[#allocation5 + $0x68] sm:$0xff] %v2261
        %2294 = vst [vmem:[#allocation5 + $0x70] sm:$0xff] %v2262
        %2295 = vst [vmem:[#allocation5 + $0x78] sm:$0xff] %v2263
        %2296 = vst [vmem:[#allocation5 + $0x80] sm:$0xff] %v2264
        %2297 = vst [vmem:[#allocation5 + $0x88] sm:$0xff] %v2265
        %2298 = vst [vmem:[#allocation5 + $0x90] sm:$0xff] %v2266
        %2299 = vst [vmem:[#allocation5 + $0x98] sm:$0xff] %v2267
        %2300 = vst [vmem:[#allocation5 + $0xa0] sm:$0xff] %v2268
        %2301 = vst [vmem:[#allocation5 + $0xa8] sm:$0xff] %v2269
        %2302 = vst [vmem:[#allocation5 + $0xb0] sm:$0xff] %v2270
        %2303 = vst [vmem:[#allocation5 + $0xb8] sm:$0xff] %v2271
        %2304 = vst [vmem:[#allocation5 + $0xc0] sm:$0xff] %v2272
        %2305 = vst [vmem:[#allocation5 + $0xc8] sm:$0xff] %v2273
        %2306 = vst [vmem:[#allocation5 + $0xd0] sm:$0xff] %v2274
        %2307 = vst [vmem:[#allocation5 + $0xd8] sm:$0xff] %v2275
        %2308 = vst [vmem:[#allocation5 + $0xe0] sm:$0xff] %v2276
        %2309 = vst [vmem:[#allocation5 + $0xe8] sm:$0xff] %v2277
        %2310 = vst [vmem:[#allocation5 + $0xf0] sm:$0xff] %v2278
        %2311 = vst [vmem:[#allocation5 + $0xf8] sm:$0xff] %v2279
        %2312 = vst.msk [vmem:[#allocation3] sm:$0xff] %vm1670, %v998
        %2313 = vst.msk [vmem:[#allocation3 + $0x8] sm:$0xff] %vm1670, %v999
        %2314 = vst.msk [vmem:[#allocation3 + $0x10] sm:$0xff] %vm1670, %v1000
        %2315 = vst.msk [vmem:[#allocation3 + $0x18] sm:$0xff] %vm1670, %v1001
        %2316 = vst.msk [vmem:[#allocation3 + $0x20] sm:$0xff] %vm1670, %v1002
        %2317 = vst.msk [vmem:[#allocation3 + $0x28] sm:$0xff] %vm1670, %v1003
        %2318 = vst.msk [vmem:[#allocation3 + $0x30] sm:$0xff] %vm1670, %v1004
        %2319 = vst.msk [vmem:[#allocation3 + $0x38] sm:$0xff] %vm1670, %v1005
        %2320 = vst.msk [vmem:[#allocation3 + $0x40] sm:$0xff] %vm1670, %v1006
        %2321 = vst.msk [vmem:[#allocation3 + $0x48] sm:$0xff] %vm1670, %v1007
        %2322 = vst.msk [vmem:[#allocation3 + $0x50] sm:$0xff] %vm1670, %v1008
        %2323 = vst.msk [vmem:[#allocation3 + $0x58] sm:$0xff] %vm1670, %v1009
        %2324 = vst.msk [vmem:[#allocation3 + $0x60] sm:$0xff] %vm1670, %v1010
        %2325 = vst.msk [vmem:[#allocation3 + $0x68] sm:$0xff] %vm1670, %v1011
        %2326 = vst.msk [vmem:[#allocation3 + $0x70] sm:$0xff] %vm1670, %v1012
        %2327 = vst.msk [vmem:[#allocation3 + $0x78] sm:$0xff] %vm1670, %v1013
        %2328 = vst.msk [vmem:[#allocation3 + $0x80] sm:$0xff] %vm1670, %v1014
        %2329 = vst.msk [vmem:[#allocation3 + $0x88] sm:$0xff] %vm1670, %v1015
        %2330 = vst.msk [vmem:[#allocation3 + $0x90] sm:$0xff] %vm1670, %v1016
        %2331 = vst.msk [vmem:[#allocation3 + $0x98] sm:$0xff] %vm1670, %v1017
        %2332 = vst.msk [vmem:[#allocation3 + $0xa0] sm:$0xff] %vm1670, %v1018
        %2333 = vst.msk [vmem:[#allocation3 + $0xa8] sm:$0xff] %vm1670, %v1019
        %2334 = vst.msk [vmem:[#allocation3 + $0xb0] sm:$0xff] %vm1670, %v1020
        %2335 = vst.msk [vmem:[#allocation3 + $0xb8] sm:$0xff] %vm1670, %v1021
        %2336 = vst.msk [vmem:[#allocation3 + $0xc0] sm:$0xff] %vm1670, %v1022
        %2337 = vst.msk [vmem:[#allocation3 + $0xc8] sm:$0xff] %vm1670, %v1023
        %2338 = vst.msk [vmem:[#allocation3 + $0xd0] sm:$0xff] %vm1670, %v1024
        %2339 = vst.msk [vmem:[#allocation3 + $0xd8] sm:$0xff] %vm1670, %v1025
        %2340 = vst.msk [vmem:[#allocation3 + $0xe0] sm:$0xff] %vm1670, %v1026
        %2341 = vst.msk [vmem:[#allocation3 + $0xe8] sm:$0xff] %vm1670, %v1027
        %2342 = vst.msk [vmem:[#allocation3 + $0xf0] sm:$0xff] %vm1670, %v1028
        %2343 = vst.msk [vmem:[#allocation3 + $0xf8] sm:$0xff] %vm1670, %v1029
        // Predicated region
        $region49: #{tpu_custom_call.1} parent=31 // pred_check
          %p2344 = pneg %p304
        $region50: #{tpu_custom_call.1} parent=31 // pred_check_branch
          %2346 = sbr.rel (%p2344) target = $region52
        $region51: #{tpu_custom_call.1} parent=31 // pred_region
          %v2347 = vld [vmem:[#allocation4] sm:$0xff]
          %v2348 = vld [vmem:[#allocation4 + $0x8] sm:$0xff]
          %v2349 = vld [vmem:[#allocation4 + $0x10] sm:$0xff]
          %v2350 = vld [vmem:[#allocation4 + $0x18] sm:$0xff]
          %v2351 = vld [vmem:[#allocation4 + $0x20] sm:$0xff]
          %v2352 = vld [vmem:[#allocation4 + $0x28] sm:$0xff]
          %v2353 = vld [vmem:[#allocation4 + $0x30] sm:$0xff]
          %v2354 = vld [vmem:[#allocation4 + $0x38] sm:$0xff]
          %v2355 = vld [vmem:[#allocation4 + $0x40] sm:$0xff]
          %v2356 = vld [vmem:[#allocation4 + $0x48] sm:$0xff]
          %v2357 = vld [vmem:[#allocation4 + $0x50] sm:$0xff]
          %v2358 = vld [vmem:[#allocation4 + $0x58] sm:$0xff]
          %v2359 = vld [vmem:[#allocation4 + $0x60] sm:$0xff]
          %v2360 = vld [vmem:[#allocation4 + $0x68] sm:$0xff]
          %v2361 = vld [vmem:[#allocation4 + $0x70] sm:$0xff]
          %v2362 = vld [vmem:[#allocation4 + $0x78] sm:$0xff]
          %v2363 = vld [vmem:[#allocation4 + $0x80] sm:$0xff]
          %v2364 = vld [vmem:[#allocation4 + $0x88] sm:$0xff]
          %v2365 = vld [vmem:[#allocation4 + $0x90] sm:$0xff]
          %v2366 = vld [vmem:[#allocation4 + $0x98] sm:$0xff]
          %v2367 = vld [vmem:[#allocation4 + $0xa0] sm:$0xff]
          %v2368 = vld [vmem:[#allocation4 + $0xa8] sm:$0xff]
          %v2369 = vld [vmem:[#allocation4 + $0xb0] sm:$0xff]
          %v2370 = vld [vmem:[#allocation4 + $0xb8] sm:$0xff]
          %v2371 = vld [vmem:[#allocation4 + $0xc0] sm:$0xff]
          %v2372 = vld [vmem:[#allocation4 + $0xc8] sm:$0xff]
          %v2373 = vld [vmem:[#allocation4 + $0xd0] sm:$0xff]
          %v2374 = vld [vmem:[#allocation4 + $0xd8] sm:$0xff]
          %v2375 = vld [vmem:[#allocation4 + $0xe0] sm:$0xff]
          %v2376 = vld [vmem:[#allocation4 + $0xe8] sm:$0xff]
          %v2377 = vld [vmem:[#allocation4 + $0xf0] sm:$0xff]
          %v2378 = vld [vmem:[#allocation4 + $0xf8] sm:$0xff]
          %v2379 = vrcp.pop %v2347
          %v2380 = vrcp.pop %v2348
          %v2381 = vrcp.pop %v2349
          %v2382 = vrcp.pop %v2350
          %v2383 = vrcp.pop %v2351
          %v2384 = vrcp.pop %v2352
          %v2385 = vrcp.pop %v2353
          %v2386 = vrcp.pop %v2354
          %v2387 = vrcp.pop %v2355
          %v2388 = vrcp.pop %v2356
          %v2389 = vrcp.pop %v2357
          %v2390 = vrcp.pop %v2358
          %v2391 = vrcp.pop %v2359
          %v2392 = vrcp.pop %v2360
          %v2393 = vrcp.pop %v2361
          %v2394 = vrcp.pop %v2362
          %v2395 = vrcp.pop %v2363
          %v2396 = vrcp.pop %v2364
          %v2397 = vrcp.pop %v2365
          %v2398 = vrcp.pop %v2366
          %v2399 = vrcp.pop %v2367
          %v2400 = vrcp.pop %v2368
          %v2401 = vrcp.pop %v2369
          %v2402 = vrcp.pop %v2370
          %v2403 = vrcp.pop %v2371
          %v2404 = vrcp.pop %v2372
          %v2405 = vrcp.pop %v2373
          %v2406 = vrcp.pop %v2374
          %v2407 = vrcp.pop %v2375
          %v2408 = vrcp.pop %v2376
          %v2409 = vrcp.pop %v2377
          %v2410 = vrcp.pop %v2378
          %v2411 = vld [vmem:[#allocation5] sm:$0xff]
          %v2412 = vld [vmem:[#allocation5 + $0x8] sm:$0xff]
          %v2413 = vld [vmem:[#allocation5 + $0x10] sm:$0xff]
          %v2414 = vld [vmem:[#allocation5 + $0x18] sm:$0xff]
          %v2415 = vld [vmem:[#allocation5 + $0x20] sm:$0xff]
          %v2416 = vld [vmem:[#allocation5 + $0x28] sm:$0xff]
          %v2417 = vld [vmem:[#allocation5 + $0x30] sm:$0xff]
          %v2418 = vld [vmem:[#allocation5 + $0x38] sm:$0xff]
          %v2419 = vld [vmem:[#allocation5 + $0x40] sm:$0xff]
          %v2420 = vld [vmem:[#allocation5 + $0x48] sm:$0xff]
          %v2421 = vld [vmem:[#allocation5 + $0x50] sm:$0xff]
          %v2422 = vld [vmem:[#allocation5 + $0x58] sm:$0xff]
          %v2423 = vld [vmem:[#allocation5 + $0x60] sm:$0xff]
          %v2424 = vld [vmem:[#allocation5 + $0x68] sm:$0xff]
          %v2425 = vld [vmem:[#allocation5 + $0x70] sm:$0xff]
          %v2426 = vld [vmem:[#allocation5 + $0x78] sm:$0xff]
          %v2427 = vld [vmem:[#allocation5 + $0x80] sm:$0xff]
          %v2428 = vld [vmem:[#allocation5 + $0x88] sm:$0xff]
          %v2429 = vld [vmem:[#allocation5 + $0x90] sm:$0xff]
          %v2430 = vld [vmem:[#allocation5 + $0x98] sm:$0xff]
          %v2431 = vld [vmem:[#allocation5 + $0xa0] sm:$0xff]
          %v2432 = vld [vmem:[#allocation5 + $0xa8] sm:$0xff]
          %v2433 = vld [vmem:[#allocation5 + $0xb0] sm:$0xff]
          %v2434 = vld [vmem:[#allocation5 + $0xb8] sm:$0xff]
          %v2435 = vld [vmem:[#allocation5 + $0xc0] sm:$0xff]
          %v2436 = vld [vmem:[#allocation5 + $0xc8] sm:$0xff]
          %v2437 = vld [vmem:[#allocation5 + $0xd0] sm:$0xff]
          %v2438 = vld [vmem:[#allocation5 + $0xd8] sm:$0xff]
          %v2439 = vld [vmem:[#allocation5 + $0xe0] sm:$0xff]
          %v2440 = vld [vmem:[#allocation5 + $0xe8] sm:$0xff]
          %v2441 = vld [vmem:[#allocation5 + $0xf0] sm:$0xff]
          %v2442 = vld [vmem:[#allocation5 + $0xf8] sm:$0xff]
          %2444 = vset.pattern.permute.xlu0 0
          %2445 = vperm.xlu0 %2444, %v2379
          %v2446 = vpop.permute.xlu0 %2445
          %2449 = vset.pattern.permute.xlu0 0
          %2450 = vperm.xlu0 %2449, %v2380
          %v2451 = vpop.permute.xlu0 %2450
          %2454 = vset.pattern.permute.xlu0 0
          %2455 = vperm.xlu0 %2454, %v2381
          %v2456 = vpop.permute.xlu0 %2455
          %2459 = vset.pattern.permute.xlu0 0
          %2460 = vperm.xlu0 %2459, %v2382
          %v2461 = vpop.permute.xlu0 %2460
          %2464 = vset.pattern.permute.xlu0 0
          %2465 = vperm.xlu0 %2464, %v2383
          %v2466 = vpop.permute.xlu0 %2465
          %2469 = vset.pattern.permute.xlu0 0
          %2470 = vperm.xlu0 %2469, %v2384
          %v2471 = vpop.permute.xlu0 %2470
          %2474 = vset.pattern.permute.xlu0 0
          %2475 = vperm.xlu0 %2474, %v2385
          %v2476 = vpop.permute.xlu0 %2475
          %2479 = vset.pattern.permute.xlu0 0
          %2480 = vperm.xlu0 %2479, %v2386
          %v2481 = vpop.permute.xlu0 %2480
          %2484 = vset.pattern.permute.xlu0 0
          %2485 = vperm.xlu0 %2484, %v2387
          %v2486 = vpop.permute.xlu0 %2485
          %2489 = vset.pattern.permute.xlu0 0
          %2490 = vperm.xlu0 %2489, %v2388
          %v2491 = vpop.permute.xlu0 %2490
          %2494 = vset.pattern.permute.xlu0 0
          %2495 = vperm.xlu0 %2494, %v2389
          %v2496 = vpop.permute.xlu0 %2495
          %2499 = vset.pattern.permute.xlu0 0
          %2500 = vperm.xlu0 %2499, %v2390
          %v2501 = vpop.permute.xlu0 %2500
          %2504 = vset.pattern.permute.xlu0 0
          %2505 = vperm.xlu0 %2504, %v2391
          %v2506 = vpop.permute.xlu0 %2505
          %2509 = vset.pattern.permute.xlu0 0
          %2510 = vperm.xlu0 %2509, %v2392
          %v2511 = vpop.permute.xlu0 %2510
          %2514 = vset.pattern.permute.xlu0 0
          %2515 = vperm.xlu0 %2514, %v2393
          %v2516 = vpop.permute.xlu0 %2515
          %2519 = vset.pattern.permute.xlu0 0
          %2520 = vperm.xlu0 %2519, %v2394
          %v2521 = vpop.permute.xlu0 %2520
          %2524 = vset.pattern.permute.xlu0 0
          %2525 = vperm.xlu0 %2524, %v2395
          %v2526 = vpop.permute.xlu0 %2525
          %2529 = vset.pattern.permute.xlu0 0
          %2530 = vperm.xlu0 %2529, %v2396
          %v2531 = vpop.permute.xlu0 %2530
          %2534 = vset.pattern.permute.xlu0 0
          %2535 = vperm.xlu0 %2534, %v2397
          %v2536 = vpop.permute.xlu0 %2535
          %2539 = vset.pattern.permute.xlu0 0
          %2540 = vperm.xlu0 %2539, %v2398
          %v2541 = vpop.permute.xlu0 %2540
          %2544 = vset.pattern.permute.xlu0 0
          %2545 = vperm.xlu0 %2544, %v2399
          %v2546 = vpop.permute.xlu0 %2545
          %2549 = vset.pattern.permute.xlu0 0
          %2550 = vperm.xlu0 %2549, %v2400
          %v2551 = vpop.permute.xlu0 %2550
          %2554 = vset.pattern.permute.xlu0 0
          %2555 = vperm.xlu0 %2554, %v2401
          %v2556 = vpop.permute.xlu0 %2555
          %2559 = vset.pattern.permute.xlu0 0
          %2560 = vperm.xlu0 %2559, %v2402
          %v2561 = vpop.permute.xlu0 %2560
          %2564 = vset.pattern.permute.xlu0 0
          %2565 = vperm.xlu0 %2564, %v2403
          %v2566 = vpop.permute.xlu0 %2565
          %2569 = vset.pattern.permute.xlu0 0
          %2570 = vperm.xlu0 %2569, %v2404
          %v2571 = vpop.permute.xlu0 %2570
          %2574 = vset.pattern.permute.xlu0 0
          %2575 = vperm.xlu0 %2574, %v2405
          %v2576 = vpop.permute.xlu0 %2575
          %2579 = vset.pattern.permute.xlu0 0
          %2580 = vperm.xlu0 %2579, %v2406
          %v2581 = vpop.permute.xlu0 %2580
          %2584 = vset.pattern.permute.xlu0 0
          %2585 = vperm.xlu0 %2584, %v2407
          %v2586 = vpop.permute.xlu0 %2585
          %2589 = vset.pattern.permute.xlu0 0
          %2590 = vperm.xlu0 %2589, %v2408
          %v2591 = vpop.permute.xlu0 %2590
          %2594 = vset.pattern.permute.xlu0 0
          %2595 = vperm.xlu0 %2594, %v2409
          %v2596 = vpop.permute.xlu0 %2595
          %2599 = vset.pattern.permute.xlu0 0
          %2600 = vperm.xlu0 %2599, %v2410
          %v2601 = vpop.permute.xlu0 %2600
          %v2603 = vmul.f32 %v2411, %v2446
          %v2604 = vmul.f32 %v2412, %v2451
          %v2605 = vmul.f32 %v2413, %v2456
          %v2606 = vmul.f32 %v2414, %v2461
          %v2607 = vmul.f32 %v2415, %v2466
          %v2608 = vmul.f32 %v2416, %v2471
          %v2609 = vmul.f32 %v2417, %v2476
          %v2610 = vmul.f32 %v2418, %v2481
          %v2611 = vmul.f32 %v2419, %v2486
          %v2612 = vmul.f32 %v2420, %v2491
          %v2613 = vmul.f32 %v2421, %v2496
          %v2614 = vmul.f32 %v2422, %v2501
          %v2615 = vmul.f32 %v2423, %v2506
          %v2616 = vmul.f32 %v2424, %v2511
          %v2617 = vmul.f32 %v2425, %v2516
          %v2618 = vmul.f32 %v2426, %v2521
          %v2619 = vmul.f32 %v2427, %v2526
          %v2620 = vmul.f32 %v2428, %v2531
          %v2621 = vmul.f32 %v2429, %v2536
          %v2622 = vmul.f32 %v2430, %v2541
          %v2623 = vmul.f32 %v2431, %v2546
          %v2624 = vmul.f32 %v2432, %v2551
          %v2625 = vmul.f32 %v2433, %v2556
          %v2626 = vmul.f32 %v2434, %v2561
          %v2627 = vmul.f32 %v2435, %v2566
          %v2628 = vmul.f32 %v2436, %v2571
          %v2629 = vmul.f32 %v2437, %v2576
          %v2630 = vmul.f32 %v2438, %v2581
          %v2631 = vmul.f32 %v2439, %v2586
          %v2632 = vmul.f32 %v2440, %v2591
          %v2633 = vmul.f32 %v2441, %v2596
          %v2634 = vmul.f32 %v2442, %v2601
          %2635 = vst [vmem:[%s298] sm:$0xff] %v2603
          %2636 = vst [vmem:[%s298 + $0x8] sm:$0xff] %v2604
          %2637 = vst [vmem:[%s298 + $0x10] sm:$0xff] %v2605
          %2638 = vst [vmem:[%s298 + $0x18] sm:$0xff] %v2606
          %2639 = vst [vmem:[%s298 + $0x20] sm:$0xff] %v2607
          %2640 = vst [vmem:[%s298 + $0x28] sm:$0xff] %v2608
          %2641 = vst [vmem:[%s298 + $0x30] sm:$0xff] %v2609
          %2642 = vst [vmem:[%s298 + $0x38] sm:$0xff] %v2610
          %2643 = vst [vmem:[%s298 + $0x40] sm:$0xff] %v2611
          %2644 = vst [vmem:[%s298 + $0x48] sm:$0xff] %v2612
          %2645 = vst [vmem:[%s298 + $0x50] sm:$0xff] %v2613
          %2646 = vst [vmem:[%s298 + $0x58] sm:$0xff] %v2614
          %2647 = vst [vmem:[%s298 + $0x60] sm:$0xff] %v2615
          %2648 = vst [vmem:[%s298 + $0x68] sm:$0xff] %v2616
          %2649 = vst [vmem:[%s298 + $0x70] sm:$0xff] %v2617
          %2650 = vst [vmem:[%s298 + $0x78] sm:$0xff] %v2618
          %2651 = vst [vmem:[%s298 + $0x80] sm:$0xff] %v2619
          %2652 = vst [vmem:[%s298 + $0x88] sm:$0xff] %v2620
          %2653 = vst [vmem:[%s298 + $0x90] sm:$0xff] %v2621
          %2654 = vst [vmem:[%s298 + $0x98] sm:$0xff] %v2622
          %2655 = vst [vmem:[%s298 + $0xa0] sm:$0xff] %v2623
          %2656 = vst [vmem:[%s298 + $0xa8] sm:$0xff] %v2624
          %2657 = vst [vmem:[%s298 + $0xb0] sm:$0xff] %v2625
          %2658 = vst [vmem:[%s298 + $0xb8] sm:$0xff] %v2626
          %2659 = vst [vmem:[%s298 + $0xc0] sm:$0xff] %v2627
          %2660 = vst [vmem:[%s298 + $0xc8] sm:$0xff] %v2628
          %2661 = vst [vmem:[%s298 + $0xd0] sm:$0xff] %v2629
          %2662 = vst [vmem:[%s298 + $0xd8] sm:$0xff] %v2630
          %2663 = vst [vmem:[%s298 + $0xe0] sm:$0xff] %v2631
          %2664 = vst [vmem:[%s298 + $0xe8] sm:$0xff] %v2632
          %2665 = vst [vmem:[%s298 + $0xf0] sm:$0xff] %v2633
          %2666 = vst [vmem:[%s298 + $0xf8] sm:$0xff] %v2634
        $region52: #{tpu_custom_call.1} parent=31 // pred_fallthru
          _
        %s2667 = sand.u32 %s136, 1
        %s2668 = scalar_lea.sflag [#allocation8], %s2667
        %s2669 = sand.u32 %s136, 1
        %s2670 = smul.addr %s2669, 256
        %s2671 = scalar_lea.vmem [#allocation12], %s2670
        // Predicated region
        $region53: #{tpu_custom_call.1} parent=31 // pred_check
          %p2672 = pneg %p146
        $region54: #{tpu_custom_call.1} parent=31 // pred_check_branch
          %2674 = sbr.rel (%p2672) target = $region56
        $region55: #{tpu_custom_call.1} parent=31 // pred_region
          %s2675 = smul.u32 32, %s29
          %s2677 = ssub.s32 4096, 4096
          %2678 = vsyncadd %s2668, %s2677
          %s2679 = smul.addr %s28, 32
          %s2680 = sadd.s32 %s2675, %s2679
          %s2681 = smul.addr %s2680, 128
          %s2682 = scalar_lea.hbm %s3, %s2681
          %s2683 = sshll.u32 %s2671, 4
          %s2684 = int_to_ptr.vmem [resolvable:$true] %s2683
          %2689 = dma.vmem_to_hbm [thread:$0]  %s2684, 4096, %s2682, %s2668, 128, 128, 8
        $region56: #{tpu_custom_call.1} parent=31 // pred_fallthru
          _
      $region32: #{tpu_custom_call.1} parent=5 // pred_fallthru
        _
      %p2690 = scmp.le.s32.totalorder 2, %s18
      // Predicated region
      $region57: #{tpu_custom_call.1} parent=5 // pred_check
        %p2691 = pneg %p2690
      $region58: #{tpu_custom_call.1} parent=5 // pred_check_branch
        %2693 = sbr.rel (%p2691) target = $region60
      $region59: #{tpu_custom_call.1} parent=5 // pred_region
        %s2694 = ssub.s32 %s18, 2
        // Predicated region
        $region61: #{tpu_custom_call.1} parent=59 // pred_check
          %p2695 = pneg %p152
        $region62: #{tpu_custom_call.1} parent=59 // pred_check_branch
          %2697 = sbr.rel (%p2695) target = $region64
        $region63: #{tpu_custom_call.1} parent=59 // pred_region
          %s2698 = sand.u32 %s137, 1
          %s2699 = scalar_lea.sflag [#allocation8], %s2698
          %s2700 = sand.u32 %s137, 1
          %s2701 = smul.addr %s2700, 256
          %s2702 = scalar_lea.vmem [#allocation12], %s2701
          %2703 = dma.done %s2699, 4096
        $region64: #{tpu_custom_call.1} parent=59 // pred_fallthru
          _
      $region60: #{tpu_custom_call.1} parent=5 // pred_fallthru
        _
    $region6: #{tpu_custom_call.1} parent=1 // loop_footer
      %s22 = sadd.s32 1, %s18
    $region7: #{tpu_custom_call.1} parent=1 // loop_footer_branch
      %17 = sbr.rel target = $region3
    $region8: #{tpu_custom_call.1} parent=1 // loop_exit
      _
    %2704 = vsyncpa [#allocation7], 1
    %s2705 = scalar_lea.sflag [#allocation7], 1
    %2706 = vsyncpa %s2705, 1
    %2707 = vsyncpa [#allocation10], 1
    %s2708 = scalar_lea.sflag [#allocation10], 1
    %2709 = vsyncpa %s2708, 1
    %2710 = vsyncpa [#allocation8], 1
    %s2711 = scalar_lea.sflag [#allocation8], 1
    %2712 = vsyncpa %s2711, 1

</llo_original>
